<compile_context>
chip_gen: v7x
topology: tpu7x:2x2x1
jax: 0.10.0
libtpu: 0.0.40
codegen_flags: <defaults>
</compile_context>

<pallas_src>
import functools

import numpy as np

import jax
import jax.numpy as jnp
from jax.experimental import pallas as pl
from jax.experimental.pallas import tpu as pltpu

EPS_BN = 1e-5
EPS_LN = 1e-5


# ------------------------------------------------------------------ fused kernel
def _fused_kernel(
    x_ref,        # (Cin_k, PB)   input pixels (channels on sublanes, pixels on lanes)
    masks_ref,    # (4, 1, PB)    [h-1 valid, h+1 valid, w-1 valid, w+1 valid]
    dw1_ref,      # (9, Cin_k, 1) depthwise taps for dsconv1
    pw1_ref,      # (Cout, Cin_k) pw1^T (BN folded)
    dwx_ref,      # (27, Cout, 1) depthwise taps: [dw2 | kdw1 | kdw2] (BN folded)
    mats_ref,     # (5, Cout, Cout) [pw2^T | proj^T | fc1^T | fc2^T | 0.1*rep^T]
    vecs_ref,     # (11, Cout, 1) biases / LN gammas / LN betas (see wrapper order)
    out_ref,      # (Cout, PB)
    *, W, PB):
    f32 = jnp.float32
    Cin_k = x_ref.shape[0]
    Cout = out_ref.shape[0]

    # Hoist the boundary-mask broadcasts: 4 (or 8) sublane broadcasts total,
    # reused by all four depthwise convs.
    mo = tuple(jnp.broadcast_to(masks_ref[i], (Cout, PB)) for i in range(4))
    mi = mo if Cin_k == Cout else tuple(
        jnp.broadcast_to(masks_ref[i], (Cin_k, PB)) for i in range(4))

    def dwconv3x3(a, wref, base, masks):
        # 3x3 depthwise conv with zero padding, factored as
        #   y = sum_dx m_w(dx)*roll( sum_dy w[dy,dx]*(m_h(dy)*roll(a, dy*W)), dx )
        # -> 4 lane rolls (XLU slot) + 13 muls / 8 adds (VPU) per conv.
        mh_m1, mh_p1, mw_m1, mw_p1 = masks
        x_u = mh_m1 * pltpu.roll(a, W % PB, axis=1)      # source row above  (dy=-1)
        x_d = mh_p1 * pltpu.roll(a, (-W) % PB, axis=1)   # source row below  (dy=+1)
        # tap index = (dy+1)*3 + (dx+1); wref[base+t] is a (C,1) per-channel scalar
        g_l = wref[base + 0] * x_u + wref[base + 3] * a + wref[base + 6] * x_d
        g_c = wref[base + 1] * x_u + wref[base + 4] * a + wref[base + 7] * x_d
        g_r = wref[base + 2] * x_u + wref[base + 5] * a + wref[base + 8] * x_d
        return (mw_m1 * pltpu.roll(g_l, 1, axis=1)
                + g_c
                + mw_p1 * pltpu.roll(g_r, PB - 1, axis=1))

    def mm(w_t, a):                              # (Cout,K) @ (K,PB), f32 accumulate
        return jnp.dot(w_t, a, preferred_element_type=f32)

    def layernorm_c(a, g, b):                    # LayerNorm over channel (sublane) axis
        mu = jnp.mean(a, axis=0, keepdims=True)
        var = jnp.mean((a - mu) ** 2, axis=0, keepdims=True)
        return (a - mu) * jax.lax.rsqrt(var + EPS_LN) * g + b

    x = x_ref[...]

    # ---- double_conv: [DW 3x3 -> PW 1x1 (+bias, BN folded) -> ReLU] x 2 ----
    y = dwconv3x3(x, dw1_ref, 0, mi)
    y = jnp.maximum(mm(pw1_ref[...], y) + vecs_ref[0], 0.0)
    y = dwconv3x3(y, dwx_ref, 0, mo)
    conv_out = jnp.maximum(mm(mats_ref[0], y) + vecs_ref[1], 0.0)

    # ---- KAN path (tokens on lanes, channels on sublanes) ----
    tok = mm(mats_ref[1], conv_out)                                  # PatchEmbed.proj (no bias)
    tok = layernorm_c(tok, vecs_ref[2], vecs_ref[3])                 # PatchEmbed.norm
    shortcut = tok
    xk = layernorm_c(tok, vecs_ref[4], vecs_ref[5])                  # KANBlock.norm
    xk = mm(mats_ref[2], xk) + vecs_ref[6]                           # fc1 (Linear fallback)
    xk = jnp.maximum(dwconv3x3(xk, dwx_ref, 9, mo) + vecs_ref[7], 0.0)   # DW_bn_relu 1
    xk = mm(mats_ref[3], xk) + vecs_ref[8]                           # fc2
    xk = jnp.maximum(dwconv3x3(xk, dwx_ref, 18, mo) + vecs_ref[9], 0.0)  # DW_bn_relu 2
    kan = mm(mats_ref[4], shortcut + xk) + vecs_ref[10]              # reproject (0.1 folded)
    out_ref[...] = conv_out + kan                                    # fused final combine


# ------------------------------------------------------------------ wrapper
def _bn_fold(gamma, beta, mean, var):
    scale = gamma / jnp.sqrt(var + EPS_BN)
    return scale, beta - mean * scale


def _round_up(n, m):
    return ((n + m - 1) // m) * m


def _prefers_batch_grid():
    # v7x has 2 TensorCores per chip: a parallel per-image grid keeps both busy.
    # On v5e/v6e (1 TC) the grid only adds ~0.35us/step at this size.
    try:
        kind = jax.devices()[0].device_kind.lower()
    except Exception:
        return False
    return ("v7" in kind) or ("7x" in kind)


def kan_double_conv_forward(x_nchw, p, *, batch_grid=None):
    B, Cin, H, W = x_nchw.shape
    Cout = p["pw1"].shape[1]
    HW = H * W
    P = B * HW
    f32 = jnp.float32

    # --- grid choice: blocks are ALWAYS whole images (roll+mask halo invariant)
    if batch_grid is None:
        batch_grid = _prefers_batch_grid()
    nblk = B if (batch_grid and B > 1 and HW % 128 == 0) else 1
    PB = P // nblk
    assert PB == HW * (B // nblk) and PB % HW == 0, "blocks must cover whole images"

    # layout plumbing only: NCHW -> (C, B*H*W) so pixels land on the lane axis.
    x = jnp.transpose(x_nchw, (1, 0, 2, 3)).reshape(Cin, P).astype(f32)

    # --- boundary-validity masks, built on the host (compile-time constants) ---
    pidx = np.arange(PB)
    hpos = (pidx % HW) // W
    wpos = pidx % W
    masks = jnp.asarray(
        np.stack([hpos >= 1, hpos + 1 < H, wpos >= 1, wpos + 1 < W])
        .astype(np.float32).reshape(4, 1, PB))

    # fold eval-mode BatchNorm (and conv biases) into weights / biases.
    s1, t1 = _bn_fold(**p["bn1"])
    s2, t2 = _bn_fold(**p["bn2"])
    sk1, tk1 = _bn_fold(**p["kbn1"])
    sk2, tk2 = _bn_fold(**p["kbn2"])

    col = lambda v: v.reshape(-1, 1).astype(f32)                # per-channel vector -> (C,1)
    taps = lambda w: w.reshape(9, -1)[:, :, None].astype(f32)   # (3,3,C) -> (9,C,1)

    # pad input channels to a full f32 sublane group (zero channels are a no-op).
    Cin_k = _round_up(Cin, 8)
    dw1_t = taps(p["dw1"])
    pw1_t = ((p["pw1"] * s1[None, :]).T).astype(f32)
    if Cin_k != Cin:
        pad = Cin_k - Cin
        x = jnp.concatenate([x, jnp.zeros((pad, P), f32)], axis=0)
        dw1_t = jnp.concatenate([dw1_t, jnp.zeros((9, pad, 1), f32)], axis=1)
        pw1_t = jnp.concatenate([pw1_t, jnp.zeros((Cout, pad), f32)], axis=1)

    # packed operand stacks (indexed in-kernel with static leading-dim slices)
    dwx = jnp.concatenate(
        [taps(p["dw2"]),
         taps(p["kdw1"]) * sk1[None, :, None],
         taps(p["kdw2"]) * sk2[None, :, None]], axis=0).astype(f32)     # (27, Cout, 1)
    mats = jnp.stack(
        [(p["pw2"] * s2[None, :]).T,
         p["proj_w"].T,
         p["fc1_w"].T,
         p["fc2_w"].T,
         0.1 * p["rep_w"].T]).astype(f32)                               # (5, Cout, Cout)
    vecs = jnp.stack(
        [col(p["pw1_b"].reshape(-1) * s1 + t1),
         col(p["pw2_b"].reshape(-1) * s2 + t2),
         col(p["pe_g"]), col(p["pe_b"]),
         col(p["kb_g"]), col(p["kb_b"]),
         col(p["fc1_b"]),
         col(p["kdw1_b"].reshape(-1) * sk1 + tk1),
         col(p["fc2_b"]),
         col(p["kdw2_b"].reshape(-1) * sk2 + tk2),
         0.1 * col(p["rep_b"])]).astype(f32)                            # (11, Cout, 1)

    args = (x, masks, dw1_t, pw1_t, dwx, mats, vecs)

    flops = (4 * 21 * max(Cin_k, Cout) * P              # depthwise taps (13 mul + 8 add) x 4
             + 2 * P * Cout * (Cin_k + 5 * Cout)        # pointwise / linear matmuls
             + 40 * Cout * P)                           # LN / ReLU / bias / residual (rough)
    bytes_accessed = 4 * ((Cin_k + Cout) * P
                          + sum(int(a.size) for a in args[1:]))

    out = pl.pallas_call(
        functools.partial(_fused_kernel, W=W, PB=PB),
        grid=(nblk,),
        out_shape=jax.ShapeDtypeStruct((Cout, P), f32),
        in_specs=[
            pl.BlockSpec((Cin_k, PB), lambda b: (0, b)),
            pl.BlockSpec((4, 1, PB), lambda b: (0, 0, 0)),
            pl.BlockSpec((9, Cin_k, 1), lambda b: (0, 0, 0)),
            pl.BlockSpec((Cout, Cin_k), lambda b: (0, 0)),
            pl.BlockSpec((27, Cout, 1), lambda b: (0, 0, 0)),
            pl.BlockSpec((5, Cout, Cout), lambda b: (0, 0, 0)),
            pl.BlockSpec((11, Cout, 1), lambda b: (0, 0, 0)),
        ],
        out_specs=pl.BlockSpec((Cout, PB), lambda b: (0, b)),
        compiler_params=pltpu.CompilerParams(dimension_semantics=("parallel",)),
        cost_estimate=pl.CostEstimate(flops=int(flops), transcendentals=int(2 * P),
                                      bytes_accessed=int(bytes_accessed)),
    )(*args)

    # (Cout, B*H*W) -> NCHW
    return jnp.transpose(out.reshape(Cout, B, H, W), (1, 0, 2, 3))


# ------------------------------------------------------------------ parameters
def init_params(key, cin, cout):
    ks = iter(jax.random.split(key, 64))

    def nrm(shape, s=0.1):
        return s * jax.random.normal(next(ks), shape, jnp.float32)

    def bn(c):
        return dict(gamma=1.0 + nrm((c,)), beta=nrm((c,)),
                    mean=nrm((c,)), var=1.0 + jnp.abs(nrm((c,))))

    return dict(
        # double_conv
        dw1=nrm((3, 3, cin)), pw1=nrm((cin, cout)), pw1_b=nrm((1, cout)), bn1=bn(cout),
        dw2=nrm((3, 3, cout)), pw2=nrm((cout, cout)), pw2_b=nrm((1, cout)), bn2=bn(cout),
        # PatchEmbed (1x1 conv, no bias) + LayerNorm
        proj_w=nrm((cout, cout)),
        pe_g=1.0 + nrm((1, cout)), pe_b=nrm((1, cout)),
        # KANBlock norm
        kb_g=1.0 + nrm((1, cout)), kb_b=nrm((1, cout)),
        # KANLayer (Linear fallback) fc1/fc2 + two DW_bn_relu
        fc1_w=nrm((cout, cout)), fc1_b=nrm((1, cout)),
        fc2_w=nrm((cout, cout)), fc2_b=nrm((1, cout)),
        kdw1=nrm((3, 3, cout)), kdw1_b=nrm((1, cout)), kbn1=bn(cout),
        kdw2=nrm((3, 3, cout)), kdw2_b=nrm((1, cout)), kbn2=bn(cout),
        # reproject 1x1 conv (+bias)
        rep_w=nrm((cout, cout)), rep_b=nrm((1, cout)),
    )


# ------------------------------------------------------------------ pure-JAX reference (for self-check)
def _reference_forward(x_nchw, p):
    B, Cin, H, W = x_nchw.shape
    Cout = p["pw1"].shape[1]
    N = H * W
    x = jnp.transpose(x_nchw, (0, 2, 3, 1)).astype(jnp.float32)   # NHWC

    mm = lambda a, b: jnp.dot(a, b, precision=jax.lax.Precision.HIGHEST)

    def bnf(d):
        s = d["gamma"] / jnp.sqrt(d["var"] + EPS_BN)
        return s, d["beta"] - d["mean"] * s

    def dw3(x, w):                               # x (B,H,W,C), w (3,3,C), zero padded
        xp = jnp.pad(x, ((0, 0), (1, 1), (1, 1), (0, 0)))
        acc = 0.0
        for dy in range(3):
            for dx in range(3):
                acc = acc + xp[:, dy:dy + H, dx:dx + W, :] * w[dy, dx]
        return acc

    def ln(x, g, b):
        mu = x.mean(-1, keepdims=True)
        var = ((x - mu) ** 2).mean(-1, keepdims=True)
        return (x - mu) * jax.lax.rsqrt(var + EPS_LN) * g + b

    s1, t1 = bnf(p["bn1"]); s2, t2 = bnf(p["bn2"])
    sk1, tk1 = bnf(p["kbn1"]); sk2, tk2 = bnf(p["kbn2"])

    y = jnp.maximum((mm(dw3(x, p["dw1"]), p["pw1"]) + p["pw1_b"]) * s1 + t1, 0.0)
    conv_out = jnp.maximum((mm(dw3(y, p["dw2"]), p["pw2"]) + p["pw2_b"]) * s2 + t2, 0.0)

    tok = mm(conv_out.reshape(B * N, Cout), p["proj_w"])
    tok = ln(tok, p["pe_g"], p["pe_b"])
    shortcut = tok
    xk = ln(tok, p["kb_g"], p["kb_b"])
    xk = mm(xk, p["fc1_w"]) + p["fc1_b"]
    xk = jnp.maximum((dw3(xk.reshape(B, H, W, Cout), p["kdw1"])
                      + p["kdw1_b"].reshape(1, 1, 1, -1)) * sk1 + tk1, 0.0).reshape(B * N, Cout)
    xk = mm(xk, p["fc2_w"]) + p["fc2_b"]
    xk = jnp.maximum((dw3(xk.reshape(B, H, W, Cout), p["kdw2"])
                      + p["kdw2_b"].reshape(1, 1, 1, -1)) * sk2 + tk2, 0.0).reshape(B * N, Cout)
    tok_out = shortcut + xk
    kan = (mm(tok_out, p["rep_w"]) + p["rep_b"]).reshape(B, H, W, Cout)
    out = conv_out + 0.1 * kan
    return jnp.transpose(out, (0, 3, 1, 2))


# ------------------------------------------------------------------ main
if __name__ == "__main__":
    B, Cin, Cout, H, W = 2, 4, 8, 16, 16
    key = jax.random.PRNGKey(0)
    kx, kp = jax.random.split(key)
    x = jax.random.normal(kx, (B, Cin, H, W), jnp.float32)
    params = init_params(kp, Cin, Cout)

    fwd = jax.jit(kan_double_conv_forward)
    out = fwd(x, params)
    jax.block_until_ready(out)
    assert out.shape == (B, Cout, H, W), out.shape
    assert bool(jnp.all(jnp.isfinite(out)))

    # numerical self-check against a pure-JAX (HIGHEST-precision) reference
    ref = jax.jit(_reference_forward)(x, params)
    jax.block_until_ready(ref)
    err = float(jnp.max(jnp.abs(out - ref)))
    scale = float(jnp.max(jnp.abs(ref)))
    assert err <= 1e-4 * scale + 1e-5, (err, scale)

    print("KERNEL_OK")
</pallas_src>

<mosaic_0001>
module attributes {stable_mosaic.version = 11 : i64} {
  func.func @_fused_kernel(%arg0: i32, %arg1: memref<8x512xf32, #tpu.memory_space<vmem>>, %arg2: memref<4x1x512xf32, #tpu.memory_space<vmem>>, %arg3: memref<9x8x1xf32, #tpu.memory_space<vmem>>, %arg4: memref<8x8xf32, #tpu.memory_space<vmem>>, %arg5: memref<27x8x1xf32, #tpu.memory_space<vmem>>, %arg6: memref<5x8x8xf32, #tpu.memory_space<vmem>>, %arg7: memref<11x8x1xf32, #tpu.memory_space<vmem>>, %arg8: memref<8x512xf32, #tpu.memory_space<vmem>>) attributes {dimension_semantics = [#tpu.dimension_semantics<parallel>], iteration_bounds = array<i64: 1>, scalar_prefetch = 0 : i64, scratch_operands = 0 : i64, tpu.core_type = #tpu.core_type<tc>, window_params = [{transform_indices = @transform_0, window_bounds = array<i64: 8, 512>}, {pipeline_mode = #tpu.pipeline_mode<synchronous>, transform_indices = @transform_1, window_bounds = array<i64: 4, 1, 512>}, {pipeline_mode = #tpu.pipeline_mode<synchronous>, transform_indices = @transform_2, window_bounds = array<i64: 9, 8, 1>}, {pipeline_mode = #tpu.pipeline_mode<synchronous>, transform_indices = @transform_3, window_bounds = array<i64: 8, 8>}, {pipeline_mode = #tpu.pipeline_mode<synchronous>, transform_indices = @transform_4, window_bounds = array<i64: 27, 8, 1>}, {pipeline_mode = #tpu.pipeline_mode<synchronous>, transform_indices = @transform_5, window_bounds = array<i64: 5, 8, 8>}, {pipeline_mode = #tpu.pipeline_mode<synchronous>, transform_indices = @transform_6, window_bounds = array<i64: 11, 8, 1>}, {transform_indices = @transform_7, window_bounds = array<i64: 8, 512>}]} {
    %c0 = arith.constant 0 : index
    %c0_0 = arith.constant 0 : index
    %c0_1 = arith.constant 0 : index
    %0 = vector.load %arg2[%c0, %c0_0, %c0_1] : memref<4x1x512xf32, #tpu.memory_space<vmem>>, vector<1x1x512xf32>
    %1 = vector.shape_cast %0 : vector<1x1x512xf32> to vector<1x512xf32>
    %2 = vector.shape_cast %1 : vector<1x512xf32> to vector<1x512xf32>
    %3 = vector.broadcast %2 : vector<1x512xf32> to vector<8x512xf32>
    %c1 = arith.constant 1 : index
    %c0_2 = arith.constant 0 : index
    %c0_3 = arith.constant 0 : index
    %4 = vector.load %arg2[%c1, %c0_2, %c0_3] : memref<4x1x512xf32, #tpu.memory_space<vmem>>, vector<1x1x512xf32>
    %5 = vector.shape_cast %4 : vector<1x1x512xf32> to vector<1x512xf32>
    %6 = vector.shape_cast %5 : vector<1x512xf32> to vector<1x512xf32>
    %7 = vector.broadcast %6 : vector<1x512xf32> to vector<8x512xf32>
    %c2 = arith.constant 2 : index
    %c0_4 = arith.constant 0 : index
    %c0_5 = arith.constant 0 : index
    %8 = vector.load %arg2[%c2, %c0_4, %c0_5] : memref<4x1x512xf32, #tpu.memory_space<vmem>>, vector<1x1x512xf32>
    %9 = vector.shape_cast %8 : vector<1x1x512xf32> to vector<1x512xf32>
    %10 = vector.shape_cast %9 : vector<1x512xf32> to vector<1x512xf32>
    %11 = vector.broadcast %10 : vector<1x512xf32> to vector<8x512xf32>
    %c3 = arith.constant 3 : index
    %c0_6 = arith.constant 0 : index
    %c0_7 = arith.constant 0 : index
    %12 = vector.load %arg2[%c3, %c0_6, %c0_7] : memref<4x1x512xf32, #tpu.memory_space<vmem>>, vector<1x1x512xf32>
    %13 = vector.shape_cast %12 : vector<1x1x512xf32> to vector<1x512xf32>
    %14 = vector.shape_cast %13 : vector<1x512xf32> to vector<1x512xf32>
    %15 = vector.broadcast %14 : vector<1x512xf32> to vector<8x512xf32>
    %c0_8 = arith.constant 0 : index
    %c0_9 = arith.constant 0 : index
    %16 = vector.load %arg1[%c0_8, %c0_9] : memref<8x512xf32, #tpu.memory_space<vmem>>, vector<8x512xf32>
    %c16_i32 = arith.constant 16 : i32
    %17 = tpu.dynamic_rotate %16 by %c16_i32 dim 1 : vector<8x512xf32>, i32 -> vector<8x512xf32>
    %18 = arith.mulf %3, %17 : vector<8x512xf32>
    %c496_i32 = arith.constant 496 : i32
    %19 = tpu.dynamic_rotate %16 by %c496_i32 dim 1 : vector<8x512xf32>, i32 -> vector<8x512xf32>
    %20 = arith.mulf %7, %19 : vector<8x512xf32>
    %c0_10 = arith.constant 0 : index
    %c0_11 = arith.constant 0 : index
    %c0_12 = arith.constant 0 : index
    %21 = vector.load %arg3[%c0_10, %c0_11, %c0_12] : memref<9x8x1xf32, #tpu.memory_space<vmem>>, vector<1x8x1xf32>
    %22 = vector.shape_cast %21 : vector<1x8x1xf32> to vector<8x1xf32>
    %23 = vector.broadcast %22 : vector<8x1xf32> to vector<8x512xf32>
    %24 = arith.mulf %23, %18 : vector<8x512xf32>
    %c3_13 = arith.constant 3 : index
    %c0_14 = arith.constant 0 : index
    %c0_15 = arith.constant 0 : index
    %25 = vector.load %arg3[%c3_13, %c0_14, %c0_15] : memref<9x8x1xf32, #tpu.memory_space<vmem>>, vector<1x8x1xf32>
    %26 = vector.shape_cast %25 : vector<1x8x1xf32> to vector<8x1xf32>
    %27 = vector.broadcast %26 : vector<8x1xf32> to vector<8x512xf32>
    %28 = arith.mulf %27, %16 : vector<8x512xf32>
    %29 = arith.addf %24, %28 : vector<8x512xf32>
    %c6 = arith.constant 6 : index
    %c0_16 = arith.constant 0 : index
    %c0_17 = arith.constant 0 : index
    %30 = vector.load %arg3[%c6, %c0_16, %c0_17] : memref<9x8x1xf32, #tpu.memory_space<vmem>>, vector<1x8x1xf32>
    %31 = vector.shape_cast %30 : vector<1x8x1xf32> to vector<8x1xf32>
    %32 = vector.broadcast %31 : vector<8x1xf32> to vector<8x512xf32>
    %33 = arith.mulf %32, %20 : vector<8x512xf32>
    %34 = arith.addf %29, %33 : vector<8x512xf32>
    %c1_18 = arith.constant 1 : index
    %c0_19 = arith.constant 0 : index
    %c0_20 = arith.constant 0 : index
    %35 = vector.load %arg3[%c1_18, %c0_19, %c0_20] : memref<9x8x1xf32, #tpu.memory_space<vmem>>, vector<1x8x1xf32>
    %36 = vector.shape_cast %35 : vector<1x8x1xf32> to vector<8x1xf32>
    %37 = vector.broadcast %36 : vector<8x1xf32> to vector<8x512xf32>
    %38 = arith.mulf %37, %18 : vector<8x512xf32>
    %c4 = arith.constant 4 : index
    %c0_21 = arith.constant 0 : index
    %c0_22 = arith.constant 0 : index
    %39 = vector.load %arg3[%c4, %c0_21, %c0_22] : memref<9x8x1xf32, #tpu.memory_space<vmem>>, vector<1x8x1xf32>
    %40 = vector.shape_cast %39 : vector<1x8x1xf32> to vector<8x1xf32>
    %41 = vector.broadcast %40 : vector<8x1xf32> to vector<8x512xf32>
    %42 = arith.mulf %41, %16 : vector<8x512xf32>
    %43 = arith.addf %38, %42 : vector<8x512xf32>
    %c7 = arith.constant 7 : index
    %c0_23 = arith.constant 0 : index
    %c0_24 = arith.constant 0 : index
    %44 = vector.load %arg3[%c7, %c0_23, %c0_24] : memref<9x8x1xf32, #tpu.memory_space<vmem>>, vector<1x8x1xf32>
    %45 = vector.shape_cast %44 : vector<1x8x1xf32> to vector<8x1xf32>
    %46 = vector.broadcast %45 : vector<8x1xf32> to vector<8x512xf32>
    %47 = arith.mulf %46, %20 : vector<8x512xf32>
    %48 = arith.addf %43, %47 : vector<8x512xf32>
    %c2_25 = arith.constant 2 : index
    %c0_26 = arith.constant 0 : index
    %c0_27 = arith.constant 0 : index
    %49 = vector.load %arg3[%c2_25, %c0_26, %c0_27] : memref<9x8x1xf32, #tpu.memory_space<vmem>>, vector<1x8x1xf32>
    %50 = vector.shape_cast %49 : vector<1x8x1xf32> to vector<8x1xf32>
    %51 = vector.broadcast %50 : vector<8x1xf32> to vector<8x512xf32>
    %52 = arith.mulf %51, %18 : vector<8x512xf32>
    %c5 = arith.constant 5 : index
    %c0_28 = arith.constant 0 : index
    %c0_29 = arith.constant 0 : index
    %53 = vector.load %arg3[%c5, %c0_28, %c0_29] : memref<9x8x1xf32, #tpu.memory_space<vmem>>, vector<1x8x1xf32>
    %54 = vector.shape_cast %53 : vector<1x8x1xf32> to vector<8x1xf32>
    %55 = vector.broadcast %54 : vector<8x1xf32> to vector<8x512xf32>
    %56 = arith.mulf %55, %16 : vector<8x512xf32>
    %57 = arith.addf %52, %56 : vector<8x512xf32>
    %c8 = arith.constant 8 : index
    %c0_30 = arith.constant 0 : index
    %c0_31 = arith.constant 0 : index
    %58 = vector.load %arg3[%c8, %c0_30, %c0_31] : memref<9x8x1xf32, #tpu.memory_space<vmem>>, vector<1x8x1xf32>
    %59 = vector.shape_cast %58 : vector<1x8x1xf32> to vector<8x1xf32>
    %60 = vector.broadcast %59 : vector<8x1xf32> to vector<8x512xf32>
    %61 = arith.mulf %60, %20 : vector<8x512xf32>
    %62 = arith.addf %57, %61 : vector<8x512xf32>
    %c1_i32 = arith.constant 1 : i32
    %63 = tpu.dynamic_rotate %34 by %c1_i32 dim 1 : vector<8x512xf32>, i32 -> vector<8x512xf32>
    %64 = arith.mulf %11, %63 : vector<8x512xf32>
    %65 = arith.addf %64, %48 : vector<8x512xf32>
    %c511_i32 = arith.constant 511 : i32
    %66 = tpu.dynamic_rotate %62 by %c511_i32 dim 1 : vector<8x512xf32>, i32 -> vector<8x512xf32>
    %67 = arith.mulf %15, %66 : vector<8x512xf32>
    %68 = arith.addf %65, %67 : vector<8x512xf32>
    %c0_32 = arith.constant 0 : index
    %c0_33 = arith.constant 0 : index
    %69 = vector.load %arg4[%c0_32, %c0_33] : memref<8x8xf32, #tpu.memory_space<vmem>>, vector<8x8xf32>
    %cst = arith.constant dense<0.000000e+00> : vector<8x512xf32>
    %70 = tpu.matmul %69, %68, %cst {dimension_numbers = #tpu.dot_dimension_numbers<[1], [0], [0], [1], [0, 0, 1, 1], [], []>} : vector<8x8xf32>, vector<8x512xf32>, vector<8x512xf32> -> vector<8x512xf32>
    %c0_34 = arith.constant 0 : index
    %c0_35 = arith.constant 0 : index
    %c0_36 = arith.constant 0 : index
    %71 = vector.load %arg7[%c0_34, %c0_35, %c0_36] : memref<11x8x1xf32, #tpu.memory_space<vmem>>, vector<1x8x1xf32>
    %72 = vector.shape_cast %71 : vector<1x8x1xf32> to vector<8x1xf32>
    %73 = vector.broadcast %72 : vector<8x1xf32> to vector<8x512xf32>
    %74 = arith.addf %70, %73 : vector<8x512xf32>
    %cst_37 = arith.constant 0.000000e+00 : f32
    %75 = vector.broadcast %cst_37 : f32 to vector<8x512xf32>
    %76 = arith.maximumf %74, %75 : vector<8x512xf32>
    %c16_i32_38 = arith.constant 16 : i32
    %77 = tpu.dynamic_rotate %76 by %c16_i32_38 dim 1 : vector<8x512xf32>, i32 -> vector<8x512xf32>
    %78 = arith.mulf %3, %77 : vector<8x512xf32>
    %c496_i32_39 = arith.constant 496 : i32
    %79 = tpu.dynamic_rotate %76 by %c496_i32_39 dim 1 : vector<8x512xf32>, i32 -> vector<8x512xf32>
    %80 = arith.mulf %7, %79 : vector<8x512xf32>
    %c0_40 = arith.constant 0 : index
    %c0_41 = arith.constant 0 : index
    %c0_42 = arith.constant 0 : index
    %81 = vector.load %arg5[%c0_40, %c0_41, %c0_42] : memref<27x8x1xf32, #tpu.memory_space<vmem>>, vector<1x8x1xf32>
    %82 = vector.shape_cast %81 : vector<1x8x1xf32> to vector<8x1xf32>
    %83 = vector.broadcast %82 : vector<8x1xf32> to vector<8x512xf32>
    %84 = arith.mulf %83, %78 : vector<8x512xf32>
    %c3_43 = arith.constant 3 : index
    %c0_44 = arith.constant 0 : index
    %c0_45 = arith.constant 0 : index
    %85 = vector.load %arg5[%c3_43, %c0_44, %c0_45] : memref<27x8x1xf32, #tpu.memory_space<vmem>>, vector<1x8x1xf32>
    %86 = vector.shape_cast %85 : vector<1x8x1xf32> to vector<8x1xf32>
    %87 = vector.broadcast %86 : vector<8x1xf32> to vector<8x512xf32>
    %88 = arith.mulf %87, %76 : vector<8x512xf32>
    %89 = arith.addf %84, %88 : vector<8x512xf32>
    %c6_46 = arith.constant 6 : index
    %c0_47 = arith.constant 0 : index
    %c0_48 = arith.constant 0 : index
    %90 = vector.load %arg5[%c6_46, %c0_47, %c0_48] : memref<27x8x1xf32, #tpu.memory_space<vmem>>, vector<1x8x1xf32>
    %91 = vector.shape_cast %90 : vector<1x8x1xf32> to vector<8x1xf32>
    %92 = vector.broadcast %91 : vector<8x1xf32> to vector<8x512xf32>
    %93 = arith.mulf %92, %80 : vector<8x512xf32>
    %94 = arith.addf %89, %93 : vector<8x512xf32>
    %c1_49 = arith.constant 1 : index
    %c0_50 = arith.constant 0 : index
    %c0_51 = arith.constant 0 : index
    %95 = vector.load %arg5[%c1_49, %c0_50, %c0_51] : memref<27x8x1xf32, #tpu.memory_space<vmem>>, vector<1x8x1xf32>
    %96 = vector.shape_cast %95 : vector<1x8x1xf32> to vector<8x1xf32>
    %97 = vector.broadcast %96 : vector<8x1xf32> to vector<8x512xf32>
    %98 = arith.mulf %97, %78 : vector<8x512xf32>
    %c4_52 = arith.constant 4 : index
    %c0_53 = arith.constant 0 : index
    %c0_54 = arith.constant 0 : index
    %99 = vector.load %arg5[%c4_52, %c0_53, %c0_54] : memref<27x8x1xf32, #tpu.memory_space<vmem>>, vector<1x8x1xf32>
    %100 = vector.shape_cast %99 : vector<1x8x1xf32> to vector<8x1xf32>
    %101 = vector.broadcast %100 : vector<8x1xf32> to vector<8x512xf32>
    %102 = arith.mulf %101, %76 : vector<8x512xf32>
    %103 = arith.addf %98, %102 : vector<8x512xf32>
    %c7_55 = arith.constant 7 : index
    %c0_56 = arith.constant 0 : index
    %c0_57 = arith.constant 0 : index
    %104 = vector.load %arg5[%c7_55, %c0_56, %c0_57] : memref<27x8x1xf32, #tpu.memory_space<vmem>>, vector<1x8x1xf32>
    %105 = vector.shape_cast %104 : vector<1x8x1xf32> to vector<8x1xf32>
    %106 = vector.broadcast %105 : vector<8x1xf32> to vector<8x512xf32>
    %107 = arith.mulf %106, %80 : vector<8x512xf32>
    %108 = arith.addf %103, %107 : vector<8x512xf32>
    %c2_58 = arith.constant 2 : index
    %c0_59 = arith.constant 0 : index
    %c0_60 = arith.constant 0 : index
    %109 = vector.load %arg5[%c2_58, %c0_59, %c0_60] : memref<27x8x1xf32, #tpu.memory_space<vmem>>, vector<1x8x1xf32>
    %110 = vector.shape_cast %109 : vector<1x8x1xf32> to vector<8x1xf32>
    %111 = vector.broadcast %110 : vector<8x1xf32> to vector<8x512xf32>
    %112 = arith.mulf %111, %78 : vector<8x512xf32>
    %c5_61 = arith.constant 5 : index
    %c0_62 = arith.constant 0 : index
    %c0_63 = arith.constant 0 : index
    %113 = vector.load %arg5[%c5_61, %c0_62, %c0_63] : memref<27x8x1xf32, #tpu.memory_space<vmem>>, vector<1x8x1xf32>
    %114 = vector.shape_cast %113 : vector<1x8x1xf32> to vector<8x1xf32>
    %115 = vector.broadcast %114 : vector<8x1xf32> to vector<8x512xf32>
    %116 = arith.mulf %115, %76 : vector<8x512xf32>
    %117 = arith.addf %112, %116 : vector<8x512xf32>
    %c8_64 = arith.constant 8 : index
    %c0_65 = arith.constant 0 : index
    %c0_66 = arith.constant 0 : index
    %118 = vector.load %arg5[%c8_64, %c0_65, %c0_66] : memref<27x8x1xf32, #tpu.memory_space<vmem>>, vector<1x8x1xf32>
    %119 = vector.shape_cast %118 : vector<1x8x1xf32> to vector<8x1xf32>
    %120 = vector.broadcast %119 : vector<8x1xf32> to vector<8x512xf32>
    %121 = arith.mulf %120, %80 : vector<8x512xf32>
    %122 = arith.addf %117, %121 : vector<8x512xf32>
    %c1_i32_67 = arith.constant 1 : i32
    %123 = tpu.dynamic_rotate %94 by %c1_i32_67 dim 1 : vector<8x512xf32>, i32 -> vector<8x512xf32>
    %124 = arith.mulf %11, %123 : vector<8x512xf32>
    %125 = arith.addf %124, %108 : vector<8x512xf32>
    %c511_i32_68 = arith.constant 511 : i32
    %126 = tpu.dynamic_rotate %122 by %c511_i32_68 dim 1 : vector<8x512xf32>, i32 -> vector<8x512xf32>
    %127 = arith.mulf %15, %126 : vector<8x512xf32>
    %128 = arith.addf %125, %127 : vector<8x512xf32>
    %c0_69 = arith.constant 0 : index
    %c0_70 = arith.constant 0 : index
    %c0_71 = arith.constant 0 : index
    %129 = vector.load %arg6[%c0_69, %c0_70, %c0_71] : memref<5x8x8xf32, #tpu.memory_space<vmem>>, vector<1x8x8xf32>
    %130 = vector.shape_cast %129 : vector<1x8x8xf32> to vector<8x8xf32>
    %cst_72 = arith.constant dense<0.000000e+00> : vector<8x512xf32>
    %131 = tpu.matmul %130, %128, %cst_72 {dimension_numbers = #tpu.dot_dimension_numbers<[1], [0], [0], [1], [0, 0, 1, 1], [], []>} : vector<8x8xf32>, vector<8x512xf32>, vector<8x512xf32> -> vector<8x512xf32>
    %c1_73 = arith.constant 1 : index
    %c0_74 = arith.constant 0 : index
    %c0_75 = arith.constant 0 : index
    %132 = vector.load %arg7[%c1_73, %c0_74, %c0_75] : memref<11x8x1xf32, #tpu.memory_space<vmem>>, vector<1x8x1xf32>
    %133 = vector.shape_cast %132 : vector<1x8x1xf32> to vector<8x1xf32>
    %134 = vector.broadcast %133 : vector<8x1xf32> to vector<8x512xf32>
    %135 = arith.addf %131, %134 : vector<8x512xf32>
    %cst_76 = arith.constant 0.000000e+00 : f32
    %136 = vector.broadcast %cst_76 : f32 to vector<8x512xf32>
    %137 = arith.maximumf %135, %136 : vector<8x512xf32>
    %c1_77 = arith.constant 1 : index
    %c0_78 = arith.constant 0 : index
    %c0_79 = arith.constant 0 : index
    %138 = vector.load %arg6[%c1_77, %c0_78, %c0_79] : memref<5x8x8xf32, #tpu.memory_space<vmem>>, vector<1x8x8xf32>
    %139 = vector.shape_cast %138 : vector<1x8x8xf32> to vector<8x8xf32>
    %cst_80 = arith.constant dense<0.000000e+00> : vector<8x512xf32>
    %140 = tpu.matmul %139, %137, %cst_80 {dimension_numbers = #tpu.dot_dimension_numbers<[1], [0], [0], [1], [0, 0, 1, 1], [], []>} : vector<8x8xf32>, vector<8x512xf32>, vector<8x512xf32> -> vector<8x512xf32>
    %c2_81 = arith.constant 2 : index
    %c0_82 = arith.constant 0 : index
    %c0_83 = arith.constant 0 : index
    %141 = vector.load %arg7[%c2_81, %c0_82, %c0_83] : memref<11x8x1xf32, #tpu.memory_space<vmem>>, vector<1x8x1xf32>
    %142 = vector.shape_cast %141 : vector<1x8x1xf32> to vector<8x1xf32>
    %c3_84 = arith.constant 3 : index
    %c0_85 = arith.constant 0 : index
    %c0_86 = arith.constant 0 : index
    %143 = vector.load %arg7[%c3_84, %c0_85, %c0_86] : memref<11x8x1xf32, #tpu.memory_space<vmem>>, vector<1x8x1xf32>
    %144 = vector.shape_cast %143 : vector<1x8x1xf32> to vector<8x1xf32>
    %cst_87 = arith.constant dense<0.000000e+00> : vector<512xf32>
    %145 = vector.multi_reduction <add>, %140, %cst_87 [0] : vector<8x512xf32> to vector<512xf32>
    %146 = vector.shape_cast %145 : vector<512xf32> to vector<1x512xf32>
    %cst_88 = arith.constant 8.000000e+00 : f32
    %147 = vector.broadcast %cst_88 : f32 to vector<1x512xf32>
    %148 = arith.divf %146, %147 : vector<1x512xf32>
    %149 = vector.broadcast %148 : vector<1x512xf32> to vector<8x512xf32>
    %150 = arith.subf %140, %149 : vector<8x512xf32>
    %151 = arith.mulf %150, %150 : vector<8x512xf32>
    %cst_89 = arith.constant dense<0.000000e+00> : vector<512xf32>
    %152 = vector.multi_reduction <add>, %151, %cst_89 [0] : vector<8x512xf32> to vector<512xf32>
    %153 = vector.shape_cast %152 : vector<512xf32> to vector<1x512xf32>
    %cst_90 = arith.constant 8.000000e+00 : f32
    %154 = vector.broadcast %cst_90 : f32 to vector<1x512xf32>
    %155 = arith.divf %153, %154 : vector<1x512xf32>
    %156 = vector.broadcast %148 : vector<1x512xf32> to vector<8x512xf32>
    %157 = arith.subf %140, %156 : vector<8x512xf32>
    %cst_91 = arith.constant 9.99999974E-6 : f32
    %158 = vector.broadcast %cst_91 : f32 to vector<1x512xf32>
    %159 = arith.addf %155, %158 : vector<1x512xf32>
    %160 = math.rsqrt %159 : vector<1x512xf32>
    %161 = vector.broadcast %160 : vector<1x512xf32> to vector<8x512xf32>
    %162 = arith.mulf %157, %161 : vector<8x512xf32>
    %163 = vector.broadcast %142 : vector<8x1xf32> to vector<8x512xf32>
    %164 = arith.mulf %162, %163 : vector<8x512xf32>
    %165 = vector.broadcast %144 : vector<8x1xf32> to vector<8x512xf32>
    %166 = arith.addf %164, %165 : vector<8x512xf32>
    %c4_92 = arith.constant 4 : index
    %c0_93 = arith.constant 0 : index
    %c0_94 = arith.constant 0 : index
    %167 = vector.load %arg7[%c4_92, %c0_93, %c0_94] : memref<11x8x1xf32, #tpu.memory_space<vmem>>, vector<1x8x1xf32>
    %168 = vector.shape_cast %167 : vector<1x8x1xf32> to vector<8x1xf32>
    %c5_95 = arith.constant 5 : index
    %c0_96 = arith.constant 0 : index
    %c0_97 = arith.constant 0 : index
    %169 = vector.load %arg7[%c5_95, %c0_96, %c0_97] : memref<11x8x1xf32, #tpu.memory_space<vmem>>, vector<1x8x1xf32>
    %170 = vector.shape_cast %169 : vector<1x8x1xf32> to vector<8x1xf32>
    %cst_98 = arith.constant dense<0.000000e+00> : vector<512xf32>
    %171 = vector.multi_reduction <add>, %166, %cst_98 [0] : vector<8x512xf32> to vector<512xf32>
    %172 = vector.shape_cast %171 : vector<512xf32> to vector<1x512xf32>
    %cst_99 = arith.constant 8.000000e+00 : f32
    %173 = vector.broadcast %cst_99 : f32 to vector<1x512xf32>
    %174 = arith.divf %172, %173 : vector<1x512xf32>
    %175 = vector.broadcast %174 : vector<1x512xf32> to vector<8x512xf32>
    %176 = arith.subf %166, %175 : vector<8x512xf32>
    %177 = arith.mulf %176, %176 : vector<8x512xf32>
    %cst_100 = arith.constant dense<0.000000e+00> : vector<512xf32>
    %178 = vector.multi_reduction <add>, %177, %cst_100 [0] : vector<8x512xf32> to vector<512xf32>
    %179 = vector.shape_cast %178 : vector<512xf32> to vector<1x512xf32>
    %cst_101 = arith.constant 8.000000e+00 : f32
    %180 = vector.broadcast %cst_101 : f32 to vector<1x512xf32>
    %181 = arith.divf %179, %180 : vector<1x512xf32>
    %182 = vector.broadcast %174 : vector<1x512xf32> to vector<8x512xf32>
    %183 = arith.subf %166, %182 : vector<8x512xf32>
    %cst_102 = arith.constant 9.99999974E-6 : f32
    %184 = vector.broadcast %cst_102 : f32 to vector<1x512xf32>
    %185 = arith.addf %181, %184 : vector<1x512xf32>
    %186 = math.rsqrt %185 : vector<1x512xf32>
    %187 = vector.broadcast %186 : vector<1x512xf32> to vector<8x512xf32>
    %188 = arith.mulf %183, %187 : vector<8x512xf32>
    %189 = vector.broadcast %168 : vector<8x1xf32> to vector<8x512xf32>
    %190 = arith.mulf %188, %189 : vector<8x512xf32>
    %191 = vector.broadcast %170 : vector<8x1xf32> to vector<8x512xf32>
    %192 = arith.addf %190, %191 : vector<8x512xf32>
    %c2_103 = arith.constant 2 : index
    %c0_104 = arith.constant 0 : index
    %c0_105 = arith.constant 0 : index
    %193 = vector.load %arg6[%c2_103, %c0_104, %c0_105] : memref<5x8x8xf32, #tpu.memory_space<vmem>>, vector<1x8x8xf32>
    %194 = vector.shape_cast %193 : vector<1x8x8xf32> to vector<8x8xf32>
    %cst_106 = arith.constant dense<0.000000e+00> : vector<8x512xf32>
    %195 = tpu.matmul %194, %192, %cst_106 {dimension_numbers = #tpu.dot_dimension_numbers<[1], [0], [0], [1], [0, 0, 1, 1], [], []>} : vector<8x8xf32>, vector<8x512xf32>, vector<8x512xf32> -> vector<8x512xf32>
    %c6_107 = arith.constant 6 : index
    %c0_108 = arith.constant 0 : index
    %c0_109 = arith.constant 0 : index
    %196 = vector.load %arg7[%c6_107, %c0_108, %c0_109] : memref<11x8x1xf32, #tpu.memory_space<vmem>>, vector<1x8x1xf32>
    %197 = vector.shape_cast %196 : vector<1x8x1xf32> to vector<8x1xf32>
    %198 = vector.broadcast %197 : vector<8x1xf32> to vector<8x512xf32>
    %199 = arith.addf %195, %198 : vector<8x512xf32>
    %c16_i32_110 = arith.constant 16 : i32
    %200 = tpu.dynamic_rotate %199 by %c16_i32_110 dim 1 : vector<8x512xf32>, i32 -> vector<8x512xf32>
    %201 = arith.mulf %3, %200 : vector<8x512xf32>
    %c496_i32_111 = arith.constant 496 : i32
    %202 = tpu.dynamic_rotate %199 by %c496_i32_111 dim 1 : vector<8x512xf32>, i32 -> vector<8x512xf32>
    %203 = arith.mulf %7, %202 : vector<8x512xf32>
    %c9 = arith.constant 9 : index
    %c0_112 = arith.constant 0 : index
    %c0_113 = arith.constant 0 : index
    %204 = vector.load %arg5[%c9, %c0_112, %c0_113] : memref<27x8x1xf32, #tpu.memory_space<vmem>>, vector<1x8x1xf32>
    %205 = vector.shape_cast %204 : vector<1x8x1xf32> to vector<8x1xf32>
    %206 = vector.broadcast %205 : vector<8x1xf32> to vector<8x512xf32>
    %207 = arith.mulf %206, %201 : vector<8x512xf32>
    %c12 = arith.constant 12 : index
    %c0_114 = arith.constant 0 : index
    %c0_115 = arith.constant 0 : index
    %208 = vector.load %arg5[%c12, %c0_114, %c0_115] : memref<27x8x1xf32, #tpu.memory_space<vmem>>, vector<1x8x1xf32>
    %209 = vector.shape_cast %208 : vector<1x8x1xf32> to vector<8x1xf32>
    %210 = vector.broadcast %209 : vector<8x1xf32> to vector<8x512xf32>
    %211 = arith.mulf %210, %199 : vector<8x512xf32>
    %212 = arith.addf %207, %211 : vector<8x512xf32>
    %c15 = arith.constant 15 : index
    %c0_116 = arith.constant 0 : index
    %c0_117 = arith.constant 0 : index
    %213 = vector.load %arg5[%c15, %c0_116, %c0_117] : memref<27x8x1xf32, #tpu.memory_space<vmem>>, vector<1x8x1xf32>
    %214 = vector.shape_cast %213 : vector<1x8x1xf32> to vector<8x1xf32>
    %215 = vector.broadcast %214 : vector<8x1xf32> to vector<8x512xf32>
    %216 = arith.mulf %215, %203 : vector<8x512xf32>
    %217 = arith.addf %212, %216 : vector<8x512xf32>
    %c10 = arith.constant 10 : index
    %c0_118 = arith.constant 0 : index
    %c0_119 = arith.constant 0 : index
    %218 = vector.load %arg5[%c10, %c0_118, %c0_119] : memref<27x8x1xf32, #tpu.memory_space<vmem>>, vector<1x8x1xf32>
    %219 = vector.shape_cast %218 : vector<1x8x1xf32> to vector<8x1xf32>
    %220 = vector.broadcast %219 : vector<8x1xf32> to vector<8x512xf32>
    %221 = arith.mulf %220, %201 : vector<8x512xf32>
    %c13 = arith.constant 13 : index
    %c0_120 = arith.constant 0 : index
    %c0_121 = arith.constant 0 : index
    %222 = vector.load %arg5[%c13, %c0_120, %c0_121] : memref<27x8x1xf32, #tpu.memory_space<vmem>>, vector<1x8x1xf32>
    %223 = vector.shape_cast %222 : vector<1x8x1xf32> to vector<8x1xf32>
    %224 = vector.broadcast %223 : vector<8x1xf32> to vector<8x512xf32>
    %225 = arith.mulf %224, %199 : vector<8x512xf32>
    %226 = arith.addf %221, %225 : vector<8x512xf32>
    %c16 = arith.constant 16 : index
    %c0_122 = arith.constant 0 : index
    %c0_123 = arith.constant 0 : index
    %227 = vector.load %arg5[%c16, %c0_122, %c0_123] : memref<27x8x1xf32, #tpu.memory_space<vmem>>, vector<1x8x1xf32>
    %228 = vector.shape_cast %227 : vector<1x8x1xf32> to vector<8x1xf32>
    %229 = vector.broadcast %228 : vector<8x1xf32> to vector<8x512xf32>
    %230 = arith.mulf %229, %203 : vector<8x512xf32>
    %231 = arith.addf %226, %230 : vector<8x512xf32>
    %c11 = arith.constant 11 : index
    %c0_124 = arith.constant 0 : index
    %c0_125 = arith.constant 0 : index
    %232 = vector.load %arg5[%c11, %c0_124, %c0_125] : memref<27x8x1xf32, #tpu.memory_space<vmem>>, vector<1x8x1xf32>
    %233 = vector.shape_cast %232 : vector<1x8x1xf32> to vector<8x1xf32>
    %234 = vector.broadcast %233 : vector<8x1xf32> to vector<8x512xf32>
    %235 = arith.mulf %234, %201 : vector<8x512xf32>
    %c14 = arith.constant 14 : index
    %c0_126 = arith.constant 0 : index
    %c0_127 = arith.constant 0 : index
    %236 = vector.load %arg5[%c14, %c0_126, %c0_127] : memref<27x8x1xf32, #tpu.memory_space<vmem>>, vector<1x8x1xf32>
    %237 = vector.shape_cast %236 : vector<1x8x1xf32> to vector<8x1xf32>
    %238 = vector.broadcast %237 : vector<8x1xf32> to vector<8x512xf32>
    %239 = arith.mulf %238, %199 : vector<8x512xf32>
    %240 = arith.addf %235, %239 : vector<8x512xf32>
    %c17 = arith.constant 17 : index
    %c0_128 = arith.constant 0 : index
    %c0_129 = arith.constant 0 : index
    %241 = vector.load %arg5[%c17, %c0_128, %c0_129] : memref<27x8x1xf32, #tpu.memory_space<vmem>>, vector<1x8x1xf32>
    %242 = vector.shape_cast %241 : vector<1x8x1xf32> to vector<8x1xf32>
    %243 = vector.broadcast %242 : vector<8x1xf32> to vector<8x512xf32>
    %244 = arith.mulf %243, %203 : vector<8x512xf32>
    %245 = arith.addf %240, %244 : vector<8x512xf32>
    %c1_i32_130 = arith.constant 1 : i32
    %246 = tpu.dynamic_rotate %217 by %c1_i32_130 dim 1 : vector<8x512xf32>, i32 -> vector<8x512xf32>
    %247 = arith.mulf %11, %246 : vector<8x512xf32>
    %248 = arith.addf %247, %231 : vector<8x512xf32>
    %c511_i32_131 = arith.constant 511 : i32
    %249 = tpu.dynamic_rotate %245 by %c511_i32_131 dim 1 : vector<8x512xf32>, i32 -> vector<8x512xf32>
    %250 = arith.mulf %15, %249 : vector<8x512xf32>
    %251 = arith.addf %248, %250 : vector<8x512xf32>
    %c7_132 = arith.constant 7 : index
    %c0_133 = arith.constant 0 : index
    %c0_134 = arith.constant 0 : index
    %252 = vector.load %arg7[%c7_132, %c0_133, %c0_134] : memref<11x8x1xf32, #tpu.memory_space<vmem>>, vector<1x8x1xf32>
    %253 = vector.shape_cast %252 : vector<1x8x1xf32> to vector<8x1xf32>
    %254 = vector.broadcast %253 : vector<8x1xf32> to vector<8x512xf32>
    %255 = arith.addf %251, %254 : vector<8x512xf32>
    %cst_135 = arith.constant 0.000000e+00 : f32
    %256 = vector.broadcast %cst_135 : f32 to vector<8x512xf32>
    %257 = arith.maximumf %255, %256 : vector<8x512xf32>
    %c3_136 = arith.constant 3 : index
    %c0_137 = arith.constant 0 : index
    %c0_138 = arith.constant 0 : index
    %258 = vector.load %arg6[%c3_136, %c0_137, %c0_138] : memref<5x8x8xf32, #tpu.memory_space<vmem>>, vector<1x8x8xf32>
    %259 = vector.shape_cast %258 : vector<1x8x8xf32> to vector<8x8xf32>
    %cst_139 = arith.constant dense<0.000000e+00> : vector<8x512xf32>
    %260 = tpu.matmul %259, %257, %cst_139 {dimension_numbers = #tpu.dot_dimension_numbers<[1], [0], [0], [1], [0, 0, 1, 1], [], []>} : vector<8x8xf32>, vector<8x512xf32>, vector<8x512xf32> -> vector<8x512xf32>
    %c8_140 = arith.constant 8 : index
    %c0_141 = arith.constant 0 : index
    %c0_142 = arith.constant 0 : index
    %261 = vector.load %arg7[%c8_140, %c0_141, %c0_142] : memref<11x8x1xf32, #tpu.memory_space<vmem>>, vector<1x8x1xf32>
    %262 = vector.shape_cast %261 : vector<1x8x1xf32> to vector<8x1xf32>
    %263 = vector.broadcast %262 : vector<8x1xf32> to vector<8x512xf32>
    %264 = arith.addf %260, %263 : vector<8x512xf32>
    %c16_i32_143 = arith.constant 16 : i32
    %265 = tpu.dynamic_rotate %264 by %c16_i32_143 dim 1 : vector<8x512xf32>, i32 -> vector<8x512xf32>
    %266 = arith.mulf %3, %265 : vector<8x512xf32>
    %c496_i32_144 = arith.constant 496 : i32
    %267 = tpu.dynamic_rotate %264 by %c496_i32_144 dim 1 : vector<8x512xf32>, i32 -> vector<8x512xf32>
    %268 = arith.mulf %7, %267 : vector<8x512xf32>
    %c18 = arith.constant 18 : index
    %c0_145 = arith.constant 0 : index
    %c0_146 = arith.constant 0 : index
    %269 = vector.load %arg5[%c18, %c0_145, %c0_146] : memref<27x8x1xf32, #tpu.memory_space<vmem>>, vector<1x8x1xf32>
    %270 = vector.shape_cast %269 : vector<1x8x1xf32> to vector<8x1xf32>
    %271 = vector.broadcast %270 : vector<8x1xf32> to vector<8x512xf32>
    %272 = arith.mulf %271, %266 : vector<8x512xf32>
    %c21 = arith.constant 21 : index
    %c0_147 = arith.constant 0 : index
    %c0_148 = arith.constant 0 : index
    %273 = vector.load %arg5[%c21, %c0_147, %c0_148] : memref<27x8x1xf32, #tpu.memory_space<vmem>>, vector<1x8x1xf32>
    %274 = vector.shape_cast %273 : vector<1x8x1xf32> to vector<8x1xf32>
    %275 = vector.broadcast %274 : vector<8x1xf32> to vector<8x512xf32>
    %276 = arith.mulf %275, %264 : vector<8x512xf32>
    %277 = arith.addf %272, %276 : vector<8x512xf32>
    %c24 = arith.constant 24 : index
    %c0_149 = arith.constant 0 : index
    %c0_150 = arith.constant 0 : index
    %278 = vector.load %arg5[%c24, %c0_149, %c0_150] : memref<27x8x1xf32, #tpu.memory_space<vmem>>, vector<1x8x1xf32>
    %279 = vector.shape_cast %278 : vector<1x8x1xf32> to vector<8x1xf32>
    %280 = vector.broadcast %279 : vector<8x1xf32> to vector<8x512xf32>
    %281 = arith.mulf %280, %268 : vector<8x512xf32>
    %282 = arith.addf %277, %281 : vector<8x512xf32>
    %c19 = arith.constant 19 : index
    %c0_151 = arith.constant 0 : index
    %c0_152 = arith.constant 0 : index
    %283 = vector.load %arg5[%c19, %c0_151, %c0_152] : memref<27x8x1xf32, #tpu.memory_space<vmem>>, vector<1x8x1xf32>
    %284 = vector.shape_cast %283 : vector<1x8x1xf32> to vector<8x1xf32>
    %285 = vector.broadcast %284 : vector<8x1xf32> to vector<8x512xf32>
    %286 = arith.mulf %285, %266 : vector<8x512xf32>
    %c22 = arith.constant 22 : index
    %c0_153 = arith.constant 0 : index
    %c0_154 = arith.constant 0 : index
    %287 = vector.load %arg5[%c22, %c0_153, %c0_154] : memref<27x8x1xf32, #tpu.memory_space<vmem>>, vector<1x8x1xf32>
    %288 = vector.shape_cast %287 : vector<1x8x1xf32> to vector<8x1xf32>
    %289 = vector.broadcast %288 : vector<8x1xf32> to vector<8x512xf32>
    %290 = arith.mulf %289, %264 : vector<8x512xf32>
    %291 = arith.addf %286, %290 : vector<8x512xf32>
    %c25 = arith.constant 25 : index
    %c0_155 = arith.constant 0 : index
    %c0_156 = arith.constant 0 : index
    %292 = vector.load %arg5[%c25, %c0_155, %c0_156] : memref<27x8x1xf32, #tpu.memory_space<vmem>>, vector<1x8x1xf32>
    %293 = vector.shape_cast %292 : vector<1x8x1xf32> to vector<8x1xf32>
    %294 = vector.broadcast %293 : vector<8x1xf32> to vector<8x512xf32>
    %295 = arith.mulf %294, %268 : vector<8x512xf32>
    %296 = arith.addf %291, %295 : vector<8x512xf32>
    %c20 = arith.constant 20 : index
    %c0_157 = arith.constant 0 : index
    %c0_158 = arith.constant 0 : index
    %297 = vector.load %arg5[%c20, %c0_157, %c0_158] : memref<27x8x1xf32, #tpu.memory_space<vmem>>, vector<1x8x1xf32>
    %298 = vector.shape_cast %297 : vector<1x8x1xf32> to vector<8x1xf32>
    %299 = vector.broadcast %298 : vector<8x1xf32> to vector<8x512xf32>
    %300 = arith.mulf %299, %266 : vector<8x512xf32>
    %c23 = arith.constant 23 : index
    %c0_159 = arith.constant 0 : index
    %c0_160 = arith.constant 0 : index
    %301 = vector.load %arg5[%c23, %c0_159, %c0_160] : memref<27x8x1xf32, #tpu.memory_space<vmem>>, vector<1x8x1xf32>
    %302 = vector.shape_cast %301 : vector<1x8x1xf32> to vector<8x1xf32>
    %303 = vector.broadcast %302 : vector<8x1xf32> to vector<8x512xf32>
    %304 = arith.mulf %303, %264 : vector<8x512xf32>
    %305 = arith.addf %300, %304 : vector<8x512xf32>
    %c26 = arith.constant 26 : index
    %c0_161 = arith.constant 0 : index
    %c0_162 = arith.constant 0 : index
    %306 = vector.load %arg5[%c26, %c0_161, %c0_162] : memref<27x8x1xf32, #tpu.memory_space<vmem>>, vector<1x8x1xf32>
    %307 = vector.shape_cast %306 : vector<1x8x1xf32> to vector<8x1xf32>
    %308 = vector.broadcast %307 : vector<8x1xf32> to vector<8x512xf32>
    %309 = arith.mulf %308, %268 : vector<8x512xf32>
    %310 = arith.addf %305, %309 : vector<8x512xf32>
    %c1_i32_163 = arith.constant 1 : i32
    %311 = tpu.dynamic_rotate %282 by %c1_i32_163 dim 1 : vector<8x512xf32>, i32 -> vector<8x512xf32>
    %312 = arith.mulf %11, %311 : vector<8x512xf32>
    %313 = arith.addf %312, %296 : vector<8x512xf32>
    %c511_i32_164 = arith.constant 511 : i32
    %314 = tpu.dynamic_rotate %310 by %c511_i32_164 dim 1 : vector<8x512xf32>, i32 -> vector<8x512xf32>
    %315 = arith.mulf %15, %314 : vector<8x512xf32>
    %316 = arith.addf %313, %315 : vector<8x512xf32>
    %c9_165 = arith.constant 9 : index
    %c0_166 = arith.constant 0 : index
    %c0_167 = arith.constant 0 : index
    %317 = vector.load %arg7[%c9_165, %c0_166, %c0_167] : memref<11x8x1xf32, #tpu.memory_space<vmem>>, vector<1x8x1xf32>
    %318 = vector.shape_cast %317 : vector<1x8x1xf32> to vector<8x1xf32>
    %319 = vector.broadcast %318 : vector<8x1xf32> to vector<8x512xf32>
    %320 = arith.addf %316, %319 : vector<8x512xf32>
    %cst_168 = arith.constant 0.000000e+00 : f32
    %321 = vector.broadcast %cst_168 : f32 to vector<8x512xf32>
    %322 = arith.maximumf %320, %321 : vector<8x512xf32>
    %c4_169 = arith.constant 4 : index
    %c0_170 = arith.constant 0 : index
    %c0_171 = arith.constant 0 : index
    %323 = vector.load %arg6[%c4_169, %c0_170, %c0_171] : memref<5x8x8xf32, #tpu.memory_space<vmem>>, vector<1x8x8xf32>
    %324 = vector.shape_cast %323 : vector<1x8x8xf32> to vector<8x8xf32>
    %325 = arith.addf %166, %322 : vector<8x512xf32>
    %cst_172 = arith.constant dense<0.000000e+00> : vector<8x512xf32>
    %326 = tpu.matmul %324, %325, %cst_172 {dimension_numbers = #tpu.dot_dimension_numbers<[1], [0], [0], [1], [0, 0, 1, 1], [], []>} : vector<8x8xf32>, vector<8x512xf32>, vector<8x512xf32> -> vector<8x512xf32>
    %c10_173 = arith.constant 10 : index
    %c0_174 = arith.constant 0 : index
    %c0_175 = arith.constant 0 : index
    %327 = vector.load %arg7[%c10_173, %c0_174, %c0_175] : memref<11x8x1xf32, #tpu.memory_space<vmem>>, vector<1x8x1xf32>
    %328 = vector.shape_cast %327 : vector<1x8x1xf32> to vector<8x1xf32>
    %329 = vector.broadcast %328 : vector<8x1xf32> to vector<8x512xf32>
    %330 = arith.addf %326, %329 : vector<8x512xf32>
    %331 = arith.addf %137, %330 : vector<8x512xf32>
    %c0_176 = arith.constant 0 : index
    %c0_177 = arith.constant 0 : index
    %332 = vector.load %arg8[%c0_176, %c0_177] : memref<8x512xf32, #tpu.memory_space<vmem>>, vector<8x512xf32>
    tpu.vector_store %arg8[%c0_176, %c0_177], %331 {strides = array<i32>} : memref<8x512xf32, #tpu.memory_space<vmem>>, vector<8x512xf32>,
    return
  }
  func.func @transform_0(%arg0: i32) -> (i32, i32) {
    %c0_i32 = arith.constant 0 : i32
    %c0_i32_0 = arith.constant 0 : i32
    return %c0_i32, %arg0 : i32, i32
  }
  func.func @transform_1(%arg0: i32) -> (i32, i32, i32) {
    %c0_i32 = arith.constant 0 : i32
    %c0_i32_0 = arith.constant 0 : i32
    %c0_i32_1 = arith.constant 0 : i32
    %c0_i32_2 = arith.constant 0 : i32
    return %c0_i32, %c0_i32_0, %c0_i32_1 : i32, i32, i32
  }
  func.func @transform_2(%arg0: i32) -> (i32, i32, i32) {
    %c0_i32 = arith.constant 0 : i32
    %c0_i32_0 = arith.constant 0 : i32
    %c0_i32_1 = arith.constant 0 : i32
    %c0_i32_2 = arith.constant 0 : i32
    return %c0_i32, %c0_i32_0, %c0_i32_1 : i32, i32, i32
  }
  func.func @transform_3(%arg0: i32) -> (i32, i32) {
    %c0_i32 = arith.constant 0 : i32
    %c0_i32_0 = arith.constant 0 : i32
    %c0_i32_1 = arith.constant 0 : i32
    return %c0_i32, %c0_i32_0 : i32, i32
  }
  func.func @transform_4(%arg0: i32) -> (i32, i32, i32) {
    %c0_i32 = arith.constant 0 : i32
    %c0_i32_0 = arith.constant 0 : i32
    %c0_i32_1 = arith.constant 0 : i32
    %c0_i32_2 = arith.constant 0 : i32
    return %c0_i32, %c0_i32_0, %c0_i32_1 : i32, i32, i32
  }
  func.func @transform_5(%arg0: i32) -> (i32, i32, i32) {
    %c0_i32 = arith.constant 0 : i32
    %c0_i32_0 = arith.constant 0 : i32
    %c0_i32_1 = arith.constant 0 : i32
    %c0_i32_2 = arith.constant 0 : i32
    return %c0_i32, %c0_i32_0, %c0_i32_1 : i32, i32, i32
  }
  func.func @transform_6(%arg0: i32) -> (i32, i32, i32) {
    %c0_i32 = arith.constant 0 : i32
    %c0_i32_0 = arith.constant 0 : i32
    %c0_i32_1 = arith.constant 0 : i32
    %c0_i32_2 = arith.constant 0 : i32
    return %c0_i32, %c0_i32_0, %c0_i32_1 : i32, i32, i32
  }
  func.func @transform_7(%arg0: i32) -> (i32, i32) {
    %c0_i32 = arith.constant 0 : i32
    %c0_i32_0 = arith.constant 0 : i32
    return %c0_i32, %arg0 : i32, i32
  }
}

</mosaic_0001>

<llo_original>
// kernel: kan_double_conv_forward.1
$region0: #{kan_double_conv_forward.1}
  #allocation0 [shape = 'u32[]', space=smem, size = 0x4, offset = 0x4, fixed_abs, tag = 'smem constant byte address 0x4 - core index']
  #allocation1 [shape = 'u32[144,128]{1,0:T(1,128)}', space=vmem, size = 0x12000, scoped, tag = 'internal scratch']
  %s0 = inlined_call_operand.vmem [shape: f32[8,512], index: 0, kind: input, shape index: {}]
  %s1 = inlined_call_operand.vmem [shape: f32[4,1,512], index: 1, kind: input, shape index: {}]
  %s2 = inlined_call_operand.vmem [shape: f32[9,8,1], index: 2, kind: input, shape index: {}]
  %s3 = inlined_call_operand.vmem [shape: f32[8,8], index: 3, kind: input, shape index: {}]
  %s4 = inlined_call_operand.vmem [shape: f32[27,8,1], index: 4, kind: input, shape index: {}]
  %s5 = inlined_call_operand.vmem [shape: f32[5,8,8], index: 5, kind: input, shape index: {}]
  %s6 = inlined_call_operand.vmem [shape: f32[11,8,1], index: 6, kind: input, shape index: {}]
  %s7 = inlined_call_operand.vmem [shape: f32[8,512], index: 7, kind: output, shape index: {}]
  %s8 = sld [smem:[#allocation0]]
  $region38: #{kan_double_conv_forward.1} parent=0
    _
  %s10 = ssub.s32 1, %s8
  %s11 = scalar_select 0, %s10, %s8
  // Predicated region
  $region2: #{kan_double_conv_forward.1} parent=0 // pred_check
    _
  $region3: #{kan_double_conv_forward.1} parent=0 // pred_check_branch
    %13 = sbr.rel (0) target = $region5
  $region4: #{kan_double_conv_forward.1} parent=0 // pred_region
    _
  $region5: #{kan_double_conv_forward.1} parent=0 // pred_fallthru
    _
  // Predicated region
  $region6: #{kan_double_conv_forward.1} parent=0 // pred_check
    _
  $region7: #{kan_double_conv_forward.1} parent=0 // pred_check_branch
    %15 = sbr.rel (0) target = $region9
  $region8: #{kan_double_conv_forward.1} parent=0 // pred_region
    _
  $region9: #{kan_double_conv_forward.1} parent=0 // pred_fallthru
    _
  // Predicated region
  $region10: #{kan_double_conv_forward.1} parent=0 // pred_check
    _
  $region11: #{kan_double_conv_forward.1} parent=0 // pred_check_branch
    %17 = sbr.rel (0) target = $region13
  $region12: #{kan_double_conv_forward.1} parent=0 // pred_region
    _
  $region13: #{kan_double_conv_forward.1} parent=0 // pred_fallthru
    _
  // Predicated region
  $region14: #{kan_double_conv_forward.1} parent=0 // pred_check
    _
  $region15: #{kan_double_conv_forward.1} parent=0 // pred_check_branch
    %19 = sbr.rel (0) target = $region17
  $region16: #{kan_double_conv_forward.1} parent=0 // pred_region
    _
  $region17: #{kan_double_conv_forward.1} parent=0 // pred_fallthru
    _
  // Predicated region
  $region18: #{kan_double_conv_forward.1} parent=0 // pred_check
    _
  $region19: #{kan_double_conv_forward.1} parent=0 // pred_check_branch
    %21 = sbr.rel (0) target = $region21
  $region20: #{kan_double_conv_forward.1} parent=0 // pred_region
    _
  $region21: #{kan_double_conv_forward.1} parent=0 // pred_fallthru
    _
  // Predicated region
  $region22: #{kan_double_conv_forward.1} parent=0 // pred_check
    _
  $region23: #{kan_double_conv_forward.1} parent=0 // pred_check_branch
    %23 = sbr.rel (0) target = $region25
  $region24: #{kan_double_conv_forward.1} parent=0 // pred_region
    _
  $region25: #{kan_double_conv_forward.1} parent=0 // pred_fallthru
    _
  // Predicated region
  $region26: #{kan_double_conv_forward.1} parent=0 // pred_check
    _
  $region27: #{kan_double_conv_forward.1} parent=0 // pred_check_branch
    %25 = sbr.rel (0) target = $region29
  $region28: #{kan_double_conv_forward.1} parent=0 // pred_region
    _
  $region29: #{kan_double_conv_forward.1} parent=0 // pred_fallthru
    _
  %v26 = vld [vmem:[%s1] sm:$0xf]
  %v28 = vlaneseq
  %v29 = vshrl.u32 %v28, 7
  %v30 = vsub.s32 0, %v29
  %v31 = vrot.slane %v26, %v30
  %v32 = vlaneseq
  %v33 = vshrl.u32 %v32, 7
  %v34 = vsub.s32 1, %v33
  %v35 = vrot.slane %v26, %v34
  %v36 = vlaneseq
  %v37 = vshrl.u32 %v36, 7
  %v38 = vsub.s32 2, %v37
  %v39 = vrot.slane %v26, %v38
  %v40 = vlaneseq
  %v41 = vshrl.u32 %v40, 7
  %v42 = vsub.s32 3, %v41
  %v43 = vrot.slane %v26, %v42
  %s48 = scalar_lea.vmem %s1, 4
  %v49 = vld [vmem:[%s48] sm:$0xf]
  %v51 = vlaneseq
  %v52 = vshrl.u32 %v51, 7
  %v53 = vsub.s32 0, %v52
  %v54 = vrot.slane %v49, %v53
  %v55 = vlaneseq
  %v56 = vshrl.u32 %v55, 7
  %v57 = vsub.s32 1, %v56
  %v58 = vrot.slane %v49, %v57
  %v59 = vlaneseq
  %v60 = vshrl.u32 %v59, 7
  %v61 = vsub.s32 2, %v60
  %v62 = vrot.slane %v49, %v61
  %v63 = vlaneseq
  %v64 = vshrl.u32 %v63, 7
  %v65 = vsub.s32 3, %v64
  %v66 = vrot.slane %v49, %v65
  %s71 = scalar_lea.vmem %s1, 8
  %v72 = vld [vmem:[%s71] sm:$0xf]
  %v74 = vlaneseq
  %v75 = vshrl.u32 %v74, 7
  %v76 = vsub.s32 0, %v75
  %v77 = vrot.slane %v72, %v76
  %v78 = vlaneseq
  %v79 = vshrl.u32 %v78, 7
  %v80 = vsub.s32 1, %v79
  %v81 = vrot.slane %v72, %v80
  %v82 = vlaneseq
  %v83 = vshrl.u32 %v82, 7
  %v84 = vsub.s32 2, %v83
  %v85 = vrot.slane %v72, %v84
  %v86 = vlaneseq
  %v87 = vshrl.u32 %v86, 7
  %v88 = vsub.s32 3, %v87
  %v89 = vrot.slane %v72, %v88
  %s94 = scalar_lea.vmem %s1, 12
  %v95 = vld [vmem:[%s94] sm:$0xf]
  %v97 = vlaneseq
  %v98 = vshrl.u32 %v97, 7
  %v99 = vsub.s32 0, %v98
  %v100 = vrot.slane %v95, %v99
  %v101 = vlaneseq
  %v102 = vshrl.u32 %v101, 7
  %v103 = vsub.s32 1, %v102
  %v104 = vrot.slane %v95, %v103
  %v105 = vlaneseq
  %v106 = vshrl.u32 %v105, 7
  %v107 = vsub.s32 2, %v106
  %v108 = vrot.slane %v95, %v107
  %v109 = vlaneseq
  %v110 = vshrl.u32 %v109, 7
  %v111 = vsub.s32 3, %v110
  %v112 = vrot.slane %v95, %v111
  %v117 = vld [vmem:[%s0] sm:$0xff]
  %v118 = vld [vmem:[%s0 + $0x8] sm:$0xff]
  %v119 = vld [vmem:[%s0 + $0x10] sm:$0xff]
  %v120 = vld [vmem:[%s0 + $0x18] sm:$0xff]
  %121 = vrot.lane.b32.xlu0 %v117, 16
  %v122 = vpop.permute.xlu0 %121
  %123 = vrot.lane.b32.xlu0 %v118, 16
  %v124 = vpop.permute.xlu0 %123
  %125 = vrot.lane.b32.xlu0 %v119, 16
  %v126 = vpop.permute.xlu0 %125
  %127 = vrot.lane.b32.xlu0 %v120, 16
  %v128 = vpop.permute.xlu0 %127
  %v129 = vlaneseq
  %v130 = vand.u32 %v129, 127
  %vm131 = vcmp.lt.s32.totalorder %v130, 16
  %v132 = vsel %vm131, %v126, %v128
  %v133 = vsel %vm131, %v124, %v126
  %v134 = vsel %vm131, %v122, %v124
  %v135 = vsel %vm131, %v128, %v122
  %v136 = vmul.f32 %v31, %v135
  %v137 = vmul.f32 %v35, %v134
  %v138 = vmul.f32 %v39, %v133
  %v139 = vmul.f32 %v43, %v132
  %140 = vrot.lane.b32.xlu0 %v117, 112
  %v141 = vpop.permute.xlu0 %140
  %142 = vrot.lane.b32.xlu0 %v118, 112
  %v143 = vpop.permute.xlu0 %142
  %144 = vrot.lane.b32.xlu0 %v119, 112
  %v145 = vpop.permute.xlu0 %144
  %146 = vrot.lane.b32.xlu0 %v120, 112
  %v147 = vpop.permute.xlu0 %146
  %vm148 = vcmp.lt.s32.totalorder %v130, 112
  %v149 = vsel %vm148, %v145, %v147
  %v150 = vsel %vm148, %v143, %v145
  %v151 = vsel %vm148, %v141, %v143
  %v152 = vsel %vm148, %v147, %v141
  %v153 = vmul.f32 %v54, %v151
  %v154 = vmul.f32 %v58, %v150
  %v155 = vmul.f32 %v62, %v149
  %v156 = vmul.f32 %v66, %v152
  %v157 = vld [vmem:[%s2] sm:$0xff]
  %159 = vset.pattern.permute.xlu0 0
  %160 = vperm.xlu0 %159, %v157
  %v161 = vpop.permute.xlu0 %160
  %v163 = vmul.f32 %v161, %v136
  %v164 = vmul.f32 %v161, %v137
  %v165 = vmul.f32 %v161, %v138
  %v166 = vmul.f32 %v161, %v139
  %s167 = scalar_lea.vmem %s2, 24
  %v168 = vld [vmem:[%s167] sm:$0xff]
  %170 = vset.pattern.permute.xlu0 0
  %171 = vperm.xlu0 %170, %v168
  %v172 = vpop.permute.xlu0 %171
  %v174 = vmul.f32 %v172, %v117
  %v175 = vmul.f32 %v172, %v118
  %v176 = vmul.f32 %v172, %v119
  %v177 = vmul.f32 %v172, %v120
  %v178 = vadd.f32 %v163, %v174
  %v179 = vadd.f32 %v164, %v175
  %v180 = vadd.f32 %v165, %v176
  %v181 = vadd.f32 %v166, %v177
  %s182 = scalar_lea.vmem %s2, 48
  %v183 = vld [vmem:[%s182] sm:$0xff]
  %185 = vset.pattern.permute.xlu0 0
  %186 = vperm.xlu0 %185, %v183
  %v187 = vpop.permute.xlu0 %186
  %v189 = vmul.f32 %v187, %v153
  %v190 = vmul.f32 %v187, %v154
  %v191 = vmul.f32 %v187, %v155
  %v192 = vmul.f32 %v187, %v156
  %v193 = vadd.f32 %v178, %v189
  %v194 = vadd.f32 %v179, %v190
  %v195 = vadd.f32 %v180, %v191
  %v196 = vadd.f32 %v181, %v192
  %s197 = scalar_lea.vmem %s2, 8
  %v198 = vld [vmem:[%s197] sm:$0xff]
  %200 = vset.pattern.permute.xlu0 0
  %201 = vperm.xlu0 %200, %v198
  %v202 = vpop.permute.xlu0 %201
  %v204 = vmul.f32 %v202, %v136
  %v205 = vmul.f32 %v202, %v137
  %v206 = vmul.f32 %v202, %v138
  %v207 = vmul.f32 %v202, %v139
  %s208 = scalar_lea.vmem %s2, 32
  %v209 = vld [vmem:[%s208] sm:$0xff]
  %211 = vset.pattern.permute.xlu0 0
  %212 = vperm.xlu0 %211, %v209
  %v213 = vpop.permute.xlu0 %212
  %v215 = vmul.f32 %v213, %v117
  %v216 = vmul.f32 %v213, %v118
  %v217 = vmul.f32 %v213, %v119
  %v218 = vmul.f32 %v213, %v120
  %v219 = vadd.f32 %v204, %v215
  %v220 = vadd.f32 %v205, %v216
  %v221 = vadd.f32 %v206, %v217
  %v222 = vadd.f32 %v207, %v218
  %s223 = scalar_lea.vmem %s2, 56
  %v224 = vld [vmem:[%s223] sm:$0xff]
  %226 = vset.pattern.permute.xlu0 0
  %227 = vperm.xlu0 %226, %v224
  %v228 = vpop.permute.xlu0 %227
  %v230 = vmul.f32 %v228, %v153
  %v231 = vmul.f32 %v228, %v154
  %v232 = vmul.f32 %v228, %v155
  %v233 = vmul.f32 %v228, %v156
  %v234 = vadd.f32 %v219, %v230
  %v235 = vadd.f32 %v220, %v231
  %v236 = vadd.f32 %v221, %v232
  %v237 = vadd.f32 %v222, %v233
  %s238 = scalar_lea.vmem %s2, 16
  %v239 = vld [vmem:[%s238] sm:$0xff]
  %241 = vset.pattern.permute.xlu0 0
  %242 = vperm.xlu0 %241, %v239
  %v243 = vpop.permute.xlu0 %242
  %v245 = vmul.f32 %v243, %v136
  %v246 = vmul.f32 %v243, %v137
  %v247 = vmul.f32 %v243, %v138
  %v248 = vmul.f32 %v243, %v139
  %s249 = scalar_lea.vmem %s2, 40
  %v250 = vld [vmem:[%s249] sm:$0xff]
  %252 = vset.pattern.permute.xlu0 0
  %253 = vperm.xlu0 %252, %v250
  %v254 = vpop.permute.xlu0 %253
  %v256 = vmul.f32 %v254, %v117
  %v257 = vmul.f32 %v254, %v118
  %v258 = vmul.f32 %v254, %v119
  %v259 = vmul.f32 %v254, %v120
  %v260 = vadd.f32 %v245, %v256
  %v261 = vadd.f32 %v246, %v257
  %v262 = vadd.f32 %v247, %v258
  %v263 = vadd.f32 %v248, %v259
  %s264 = scalar_lea.vmem %s2, 64
  %v265 = vld [vmem:[%s264] sm:$0xff]
  %267 = vset.pattern.permute.xlu0 0
  %268 = vperm.xlu0 %267, %v265
  %v269 = vpop.permute.xlu0 %268
  %v271 = vmul.f32 %v269, %v153
  %v272 = vmul.f32 %v269, %v154
  %v273 = vmul.f32 %v269, %v155
  %v274 = vmul.f32 %v269, %v156
  %v275 = vadd.f32 %v260, %v271
  %v276 = vadd.f32 %v261, %v272
  %v277 = vadd.f32 %v262, %v273
  %v278 = vadd.f32 %v263, %v274
  %279 = vrot.lane.b32.xlu0 %v193, 1
  %v280 = vpop.permute.xlu0 %279
  %281 = vrot.lane.b32.xlu0 %v194, 1
  %v282 = vpop.permute.xlu0 %281
  %283 = vrot.lane.b32.xlu0 %v195, 1
  %v284 = vpop.permute.xlu0 %283
  %285 = vrot.lane.b32.xlu0 %v196, 1
  %v286 = vpop.permute.xlu0 %285
  %vm287 = vcmp.lt.s32.totalorder %v130, 1
  %v288 = vsel %vm287, %v284, %v286
  %v289 = vsel %vm287, %v282, %v284
  %v290 = vsel %vm287, %v280, %v282
  %v291 = vsel %vm287, %v286, %v280
  %v292 = vmul.f32 %v77, %v291
  %v293 = vmul.f32 %v81, %v290
  %v294 = vmul.f32 %v85, %v289
  %v295 = vmul.f32 %v89, %v288
  %v296 = vadd.f32 %v292, %v234
  %v297 = vadd.f32 %v293, %v235
  %v298 = vadd.f32 %v294, %v236
  %v299 = vadd.f32 %v295, %v237
  %300 = vrot.lane.b32.xlu0 %v275, 127
  %v301 = vpop.permute.xlu0 %300
  %302 = vrot.lane.b32.xlu0 %v276, 127
  %v303 = vpop.permute.xlu0 %302
  %304 = vrot.lane.b32.xlu0 %v277, 127
  %v305 = vpop.permute.xlu0 %304
  %306 = vrot.lane.b32.xlu0 %v278, 127
  %v307 = vpop.permute.xlu0 %306
  %vm308 = vcmp.lt.s32.totalorder %v130, 127
  %v309 = vsel %vm308, %v305, %v307
  %v310 = vsel %vm308, %v303, %v305
  %v311 = vsel %vm308, %v301, %v303
  %v312 = vsel %vm308, %v307, %v301
  %v313 = vmul.f32 %v100, %v311
  %v314 = vmul.f32 %v104, %v310
  %v315 = vmul.f32 %v108, %v309
  %v316 = vmul.f32 %v112, %v312
  %v317 = vadd.f32 %v296, %v313
  %v318 = vadd.f32 %v297, %v314
  %v319 = vadd.f32 %v298, %v315
  %v320 = vadd.f32 %v299, %v316
  %v321 = vld [vmem:[%s3] sm:$0xff]
  %v322 = vld [vmem:[%s6] sm:$0xff]
  %324 = vset.pattern.permute.xlu0 0
  %325 = vperm.xlu0 %324, %v322
  %v326 = vpop.permute.xlu0 %325
  %vm328 = vcmask 64512
  %v330 = vsel %vm328, %v321, 0
  %332 = vmatprep.subr.mxu0 %v318
  %333 = vmatpush1.msra.mxu0 %v317
  %334 = vmatprep.subr.mxu0 0.0
  %335 = vmatpush1.msra.mxu0 0.0
  %336 = vmatprep.subr.mxu0 0.0
  %337 = vmatpush1.msra.mxu0 0.0
  %338 = vmatprep.subr.mxu0 0.0
  %339 = vmatpush1.msra.mxu0 0.0
  %340 = vmatprep.subr.mxu0 0.0
  %341 = vmatpush1.msra.mxu0 0.0
  %342 = vmatprep.subr.mxu0 0.0
  %343 = vmatpush1.msra.mxu0 0.0
  %344 = vmatprep.subr.mxu0 0.0
  %345 = vmatpush1.msra.mxu0 0.0
  %346 = vmatprep.subr.mxu0 0.0
  %347 = vmatpush1.msra.mxu0 0.0
  %348 = vmatprep.subr.mxu0 0.0
  %349 = vmatpush1.msra.mxu0 0.0
  %350 = vmatprep.subr.mxu0 0.0
  %351 = vmatpush1.msra.mxu0 0.0
  %352 = vmatprep.subr.mxu0 0.0
  %353 = vmatpush1.msra.mxu0 0.0
  %354 = vmatprep.subr.mxu0 0.0
  %355 = vmatpush1.msra.mxu0 0.0
  %356 = vmatprep.subr.mxu0 0.0
  %357 = vmatpush1.msra.mxu0 0.0
  %358 = vmatprep.subr.mxu0 0.0
  %359 = vmatpush1.msra.mxu0 0.0
  %360 = vmatprep.subr.mxu0 0.0
  %361 = vmatpush1.msra.mxu0 0.0
  %362 = vmatprep.subr.mxu0 0.0
  %363 = vmatpush1.msra.mxu0 0.0
  %364 = vmatprep.subr.mxu0 0.0
  %365 = vmatpush1.msra.mxu0 0.0
  %366 = vmatprep.subr.mxu0 0.0
  %367 = vmatpush1.msra.mxu0 0.0
  %368 = vmatprep.subr.mxu0 0.0
  %369 = vmatpush1.msra.mxu0 0.0
  %370 = vmatprep.subr.mxu0 0.0
  %371 = vmatpush1.msra.mxu0 0.0
  %372 = vmatprep.subr.mxu0 0.0
  %373 = vmatpush1.msra.mxu0 0.0
  %374 = vmatprep.subr.mxu0 0.0
  %375 = vmatpush1.msra.mxu0 0.0
  %376 = vmatprep.subr.mxu0 0.0
  %377 = vmatpush1.msra.mxu0 0.0
  %378 = vmatprep.subr.mxu0 0.0
  %379 = vmatpush1.msra.mxu0 0.0
  %380 = vmatprep.subr.mxu0 0.0
  %381 = vmatpush1.msra.mxu0 0.0
  %382 = vmatprep.subr.mxu0 0.0
  %383 = vmatpush1.msra.mxu0 0.0
  %384 = vmatprep.subr.mxu0 0.0
  %385 = vmatpush1.msra.mxu0 0.0
  %386 = vmatprep.subr.mxu0 0.0
  %387 = vmatpush1.msra.mxu0 0.0
  %388 = vmatprep.subr.mxu0 0.0
  %389 = vmatpush1.msra.mxu0 0.0
  %390 = vmatprep.subr.mxu0 0.0
  %391 = vmatpush1.msra.mxu0 0.0
  %392 = vmatprep.subr.mxu0 0.0
  %393 = vmatpush1.msra.mxu0 0.0
  %394 = vmatprep.subr.mxu0 0.0
  %395 = vmatpush1.msra.mxu0 0.0
  %396 = vmatprep.mubr.f32.mxu0 0.0
  %397 = vmatmul.mubr.f32.gmra.mrb[0].mxu0 %v330
  %v398 = vpop.f32.mrb[0].mxu0
  %v399 = vadd.f32 %v326, %v398
  %v400 = vpop.f32.mrb[0].mxu0
  %v401 = vadd.f32 %v326, %v400
  %402 = vdwg.mxu0
  %403 = vmatprep.subr.mxu0 %v320
  %404 = vmatpush1.msra.mxu0 %v319
  %405 = vmatprep.subr.mxu0 0.0
  %406 = vmatpush1.msra.mxu0 0.0
  %407 = vmatprep.subr.mxu0 0.0
  %408 = vmatpush1.msra.mxu0 0.0
  %409 = vmatprep.subr.mxu0 0.0
  %410 = vmatpush1.msra.mxu0 0.0
  %411 = vmatprep.subr.mxu0 0.0
  %412 = vmatpush1.msra.mxu0 0.0
  %413 = vmatprep.subr.mxu0 0.0
  %414 = vmatpush1.msra.mxu0 0.0
  %415 = vmatprep.subr.mxu0 0.0
  %416 = vmatpush1.msra.mxu0 0.0
  %417 = vmatprep.subr.mxu0 0.0
  %418 = vmatpush1.msra.mxu0 0.0
  %419 = vmatprep.subr.mxu0 0.0
  %420 = vmatpush1.msra.mxu0 0.0
  %421 = vmatprep.subr.mxu0 0.0
  %422 = vmatpush1.msra.mxu0 0.0
  %423 = vmatprep.subr.mxu0 0.0
  %424 = vmatpush1.msra.mxu0 0.0
  %425 = vmatprep.subr.mxu0 0.0
  %426 = vmatpush1.msra.mxu0 0.0
  %427 = vmatprep.subr.mxu0 0.0
  %428 = vmatpush1.msra.mxu0 0.0
  %429 = vmatprep.subr.mxu0 0.0
  %430 = vmatpush1.msra.mxu0 0.0
  %431 = vmatprep.subr.mxu0 0.0
  %432 = vmatpush1.msra.mxu0 0.0
  %433 = vmatprep.subr.mxu0 0.0
  %434 = vmatpush1.msra.mxu0 0.0
  %435 = vmatprep.subr.mxu0 0.0
  %436 = vmatpush1.msra.mxu0 0.0
  %437 = vmatprep.subr.mxu0 0.0
  %438 = vmatpush1.msra.mxu0 0.0
  %439 = vmatprep.subr.mxu0 0.0
  %440 = vmatpush1.msra.mxu0 0.0
  %441 = vmatprep.subr.mxu0 0.0
  %442 = vmatpush1.msra.mxu0 0.0
  %443 = vmatprep.subr.mxu0 0.0
  %444 = vmatpush1.msra.mxu0 0.0
  %445 = vmatprep.subr.mxu0 0.0
  %446 = vmatpush1.msra.mxu0 0.0
  %447 = vmatprep.subr.mxu0 0.0
  %448 = vmatpush1.msra.mxu0 0.0
  %449 = vmatprep.subr.mxu0 0.0
  %450 = vmatpush1.msra.mxu0 0.0
  %451 = vmatprep.subr.mxu0 0.0
  %452 = vmatpush1.msra.mxu0 0.0
  %453 = vmatprep.subr.mxu0 0.0
  %454 = vmatpush1.msra.mxu0 0.0
  %455 = vmatprep.subr.mxu0 0.0
  %456 = vmatpush1.msra.mxu0 0.0
  %457 = vmatprep.subr.mxu0 0.0
  %458 = vmatpush1.msra.mxu0 0.0
  %459 = vmatprep.subr.mxu0 0.0
  %460 = vmatpush1.msra.mxu0 0.0
  %461 = vmatprep.subr.mxu0 0.0
  %462 = vmatpush1.msra.mxu0 0.0
  %463 = vmatprep.subr.mxu0 0.0
  %464 = vmatpush1.msra.mxu0 0.0
  %465 = vmatprep.subr.mxu0 0.0
  %466 = vmatpush1.msra.mxu0 0.0
  %467 = vmatprep.mubr.f32.mxu0 0.0
  %468 = vmatmul.mubr.f32.gmra.mrb[0].mxu0 %v330
  %v469 = vpop.f32.mrb[0].mxu0
  %v470 = vadd.f32 %v326, %v469
  %v471 = vpop.f32.mrb[0].mxu0
  %v472 = vadd.f32 %v326, %v471
  %473 = vdwg.mxu0
  %v474 = vmax.f32 %v399, 0.0
  %v475 = vmax.f32 %v401, 0.0
  %v476 = vmax.f32 %v470, 0.0
  %v477 = vmax.f32 %v472, 0.0
  %478 = vrot.lane.b32.xlu0 %v474, 16
  %v479 = vpop.permute.xlu0 %478
  %480 = vrot.lane.b32.xlu0 %v475, 16
  %v481 = vpop.permute.xlu0 %480
  %482 = vrot.lane.b32.xlu0 %v476, 16
  %v483 = vpop.permute.xlu0 %482
  %484 = vrot.lane.b32.xlu0 %v477, 16
  %v485 = vpop.permute.xlu0 %484
  %v486 = vsel %vm131, %v483, %v485
  %v487 = vsel %vm131, %v481, %v483
  %v488 = vsel %vm131, %v479, %v481
  %v489 = vsel %vm131, %v485, %v479
  %v490 = vmul.f32 %v31, %v489
  %v491 = vmul.f32 %v35, %v488
  %v492 = vmul.f32 %v39, %v487
  %v493 = vmul.f32 %v43, %v486
  %494 = vrot.lane.b32.xlu0 %v474, 112
  %v495 = vpop.permute.xlu0 %494
  %496 = vrot.lane.b32.xlu0 %v475, 112
  %v497 = vpop.permute.xlu0 %496
  %498 = vrot.lane.b32.xlu0 %v476, 112
  %v499 = vpop.permute.xlu0 %498
  %500 = vrot.lane.b32.xlu0 %v477, 112
  %v501 = vpop.permute.xlu0 %500
  %v502 = vsel %vm148, %v499, %v501
  %v503 = vsel %vm148, %v497, %v499
  %v504 = vsel %vm148, %v495, %v497
  %v505 = vsel %vm148, %v501, %v495
  %v506 = vmul.f32 %v54, %v504
  %v507 = vmul.f32 %v58, %v503
  %v508 = vmul.f32 %v62, %v502
  %v509 = vmul.f32 %v66, %v505
  %v510 = vld [vmem:[%s4] sm:$0xff]
  %512 = vset.pattern.permute.xlu0 0
  %513 = vperm.xlu0 %512, %v510
  %v514 = vpop.permute.xlu0 %513
  %v516 = vmul.f32 %v514, %v490
  %v517 = vmul.f32 %v514, %v491
  %v518 = vmul.f32 %v514, %v492
  %v519 = vmul.f32 %v514, %v493
  %s520 = scalar_lea.vmem %s4, 24
  %v521 = vld [vmem:[%s520] sm:$0xff]
  %523 = vset.pattern.permute.xlu0 0
  %524 = vperm.xlu0 %523, %v521
  %v525 = vpop.permute.xlu0 %524
  %v527 = vmul.f32 %v525, %v474
  %v528 = vmul.f32 %v525, %v475
  %v529 = vmul.f32 %v525, %v476
  %v530 = vmul.f32 %v525, %v477
  %v531 = vadd.f32 %v516, %v527
  %v532 = vadd.f32 %v517, %v528
  %v533 = vadd.f32 %v518, %v529
  %v534 = vadd.f32 %v519, %v530
  %s535 = scalar_lea.vmem %s4, 48
  %v536 = vld [vmem:[%s535] sm:$0xff]
  %538 = vset.pattern.permute.xlu0 0
  %539 = vperm.xlu0 %538, %v536
  %v540 = vpop.permute.xlu0 %539
  %v542 = vmul.f32 %v540, %v506
  %v543 = vmul.f32 %v540, %v507
  %v544 = vmul.f32 %v540, %v508
  %v545 = vmul.f32 %v540, %v509
  %v546 = vadd.f32 %v531, %v542
  %v547 = vadd.f32 %v532, %v543
  %v548 = vadd.f32 %v533, %v544
  %v549 = vadd.f32 %v534, %v545
  %s550 = scalar_lea.vmem %s4, 8
  %v551 = vld [vmem:[%s550] sm:$0xff]
  %553 = vset.pattern.permute.xlu0 0
  %554 = vperm.xlu0 %553, %v551
  %v555 = vpop.permute.xlu0 %554
  %v557 = vmul.f32 %v555, %v490
  %v558 = vmul.f32 %v555, %v491
  %v559 = vmul.f32 %v555, %v492
  %v560 = vmul.f32 %v555, %v493
  %s561 = scalar_lea.vmem %s4, 32
  %v562 = vld [vmem:[%s561] sm:$0xff]
  %564 = vset.pattern.permute.xlu0 0
  %565 = vperm.xlu0 %564, %v562
  %v566 = vpop.permute.xlu0 %565
  %v568 = vmul.f32 %v566, %v474
  %v569 = vmul.f32 %v566, %v475
  %v570 = vmul.f32 %v566, %v476
  %v571 = vmul.f32 %v566, %v477
  %v572 = vadd.f32 %v557, %v568
  %v573 = vadd.f32 %v558, %v569
  %v574 = vadd.f32 %v559, %v570
  %v575 = vadd.f32 %v560, %v571
  %s576 = scalar_lea.vmem %s4, 56
  %v577 = vld [vmem:[%s576] sm:$0xff]
  %579 = vset.pattern.permute.xlu0 0
  %580 = vperm.xlu0 %579, %v577
  %v581 = vpop.permute.xlu0 %580
  %v583 = vmul.f32 %v581, %v506
  %v584 = vmul.f32 %v581, %v507
  %v585 = vmul.f32 %v581, %v508
  %v586 = vmul.f32 %v581, %v509
  %v587 = vadd.f32 %v572, %v583
  %v588 = vadd.f32 %v573, %v584
  %v589 = vadd.f32 %v574, %v585
  %v590 = vadd.f32 %v575, %v586
  %s591 = scalar_lea.vmem %s4, 16
  %v592 = vld [vmem:[%s591] sm:$0xff]
  %594 = vset.pattern.permute.xlu0 0
  %595 = vperm.xlu0 %594, %v592
  %v596 = vpop.permute.xlu0 %595
  %v598 = vmul.f32 %v596, %v490
  %v599 = vmul.f32 %v596, %v491
  %v600 = vmul.f32 %v596, %v492
  %v601 = vmul.f32 %v596, %v493
  %s602 = scalar_lea.vmem %s4, 40
  %v603 = vld [vmem:[%s602] sm:$0xff]
  %605 = vset.pattern.permute.xlu0 0
  %606 = vperm.xlu0 %605, %v603
  %v607 = vpop.permute.xlu0 %606
  %v609 = vmul.f32 %v607, %v474
  %v610 = vmul.f32 %v607, %v475
  %v611 = vmul.f32 %v607, %v476
  %v612 = vmul.f32 %v607, %v477
  %v613 = vadd.f32 %v598, %v609
  %v614 = vadd.f32 %v599, %v610
  %v615 = vadd.f32 %v600, %v611
  %v616 = vadd.f32 %v601, %v612
  %s617 = scalar_lea.vmem %s4, 64
  %v618 = vld [vmem:[%s617] sm:$0xff]
  %620 = vset.pattern.permute.xlu0 0
  %621 = vperm.xlu0 %620, %v618
  %v622 = vpop.permute.xlu0 %621
  %v624 = vmul.f32 %v622, %v506
  %v625 = vmul.f32 %v622, %v507
  %v626 = vmul.f32 %v622, %v508
  %v627 = vmul.f32 %v622, %v509
  %v628 = vadd.f32 %v613, %v624
  %v629 = vadd.f32 %v614, %v625
  %v630 = vadd.f32 %v615, %v626
  %v631 = vadd.f32 %v616, %v627
  %632 = vrot.lane.b32.xlu0 %v546, 1
  %v633 = vpop.permute.xlu0 %632
  %634 = vrot.lane.b32.xlu0 %v547, 1
  %v635 = vpop.permute.xlu0 %634
  %636 = vrot.lane.b32.xlu0 %v548, 1
  %v637 = vpop.permute.xlu0 %636
  %638 = vrot.lane.b32.xlu0 %v549, 1
  %v639 = vpop.permute.xlu0 %638
  %v640 = vsel %vm287, %v637, %v639
  %v641 = vsel %vm287, %v635, %v637
  %v642 = vsel %vm287, %v633, %v635
  %v643 = vsel %vm287, %v639, %v633
  %v644 = vmul.f32 %v77, %v643
  %v645 = vmul.f32 %v81, %v642
  %v646 = vmul.f32 %v85, %v641
  %v647 = vmul.f32 %v89, %v640
  %v648 = vadd.f32 %v644, %v587
  %v649 = vadd.f32 %v645, %v588
  %v650 = vadd.f32 %v646, %v589
  %v651 = vadd.f32 %v647, %v590
  %652 = vrot.lane.b32.xlu0 %v628, 127
  %v653 = vpop.permute.xlu0 %652
  %654 = vrot.lane.b32.xlu0 %v629, 127
  %v655 = vpop.permute.xlu0 %654
  %656 = vrot.lane.b32.xlu0 %v630, 127
  %v657 = vpop.permute.xlu0 %656
  %658 = vrot.lane.b32.xlu0 %v631, 127
  %v659 = vpop.permute.xlu0 %658
  %v660 = vsel %vm308, %v657, %v659
  %v661 = vsel %vm308, %v655, %v657
  %v662 = vsel %vm308, %v653, %v655
  %v663 = vsel %vm308, %v659, %v653
  %v664 = vmul.f32 %v100, %v662
  %v665 = vmul.f32 %v104, %v661
  %v666 = vmul.f32 %v108, %v660
  %v667 = vmul.f32 %v112, %v663
  %v668 = vadd.f32 %v648, %v664
  %v669 = vadd.f32 %v649, %v665
  %v670 = vadd.f32 %v650, %v666
  %v671 = vadd.f32 %v651, %v667
  %v672 = vld [vmem:[%s5] sm:$0xff]
  %s673 = scalar_lea.vmem %s6, 8
  %v674 = vld [vmem:[%s673] sm:$0xff]
  %676 = vset.pattern.permute.xlu0 0
  %677 = vperm.xlu0 %676, %v674
  %v678 = vpop.permute.xlu0 %677
  %v681 = vsel %vm328, %v672, 0
  %683 = vmatprep.subr.mxu0 %v669
  %684 = vmatpush1.msra.mxu0 %v668
  %685 = vmatprep.subr.mxu0 0.0
  %686 = vmatpush1.msra.mxu0 0.0
  %687 = vmatprep.subr.mxu0 0.0
  %688 = vmatpush1.msra.mxu0 0.0
  %689 = vmatprep.subr.mxu0 0.0
  %690 = vmatpush1.msra.mxu0 0.0
  %691 = vmatprep.subr.mxu0 0.0
  %692 = vmatpush1.msra.mxu0 0.0
  %693 = vmatprep.subr.mxu0 0.0
  %694 = vmatpush1.msra.mxu0 0.0
  %695 = vmatprep.subr.mxu0 0.0
  %696 = vmatpush1.msra.mxu0 0.0
  %697 = vmatprep.subr.mxu0 0.0
  %698 = vmatpush1.msra.mxu0 0.0
  %699 = vmatprep.subr.mxu0 0.0
  %700 = vmatpush1.msra.mxu0 0.0
  %701 = vmatprep.subr.mxu0 0.0
  %702 = vmatpush1.msra.mxu0 0.0
  %703 = vmatprep.subr.mxu0 0.0
  %704 = vmatpush1.msra.mxu0 0.0
  %705 = vmatprep.subr.mxu0 0.0
  %706 = vmatpush1.msra.mxu0 0.0
  %707 = vmatprep.subr.mxu0 0.0
  %708 = vmatpush1.msra.mxu0 0.0
  %709 = vmatprep.subr.mxu0 0.0
  %710 = vmatpush1.msra.mxu0 0.0
  %711 = vmatprep.subr.mxu0 0.0
  %712 = vmatpush1.msra.mxu0 0.0
  %713 = vmatprep.subr.mxu0 0.0
  %714 = vmatpush1.msra.mxu0 0.0
  %715 = vmatprep.subr.mxu0 0.0
  %716 = vmatpush1.msra.mxu0 0.0
  %717 = vmatprep.subr.mxu0 0.0
  %718 = vmatpush1.msra.mxu0 0.0
  %719 = vmatprep.subr.mxu0 0.0
  %720 = vmatpush1.msra.mxu0 0.0
  %721 = vmatprep.subr.mxu0 0.0
  %722 = vmatpush1.msra.mxu0 0.0
  %723 = vmatprep.subr.mxu0 0.0
  %724 = vmatpush1.msra.mxu0 0.0
  %725 = vmatprep.subr.mxu0 0.0
  %726 = vmatpush1.msra.mxu0 0.0
  %727 = vmatprep.subr.mxu0 0.0
  %728 = vmatpush1.msra.mxu0 0.0
  %729 = vmatprep.subr.mxu0 0.0
  %730 = vmatpush1.msra.mxu0 0.0
  %731 = vmatprep.subr.mxu0 0.0
  %732 = vmatpush1.msra.mxu0 0.0
  %733 = vmatprep.subr.mxu0 0.0
  %734 = vmatpush1.msra.mxu0 0.0
  %735 = vmatprep.subr.mxu0 0.0
  %736 = vmatpush1.msra.mxu0 0.0
  %737 = vmatprep.subr.mxu0 0.0
  %738 = vmatpush1.msra.mxu0 0.0
  %739 = vmatprep.subr.mxu0 0.0
  %740 = vmatpush1.msra.mxu0 0.0
  %741 = vmatprep.subr.mxu0 0.0
  %742 = vmatpush1.msra.mxu0 0.0
  %743 = vmatprep.subr.mxu0 0.0
  %744 = vmatpush1.msra.mxu0 0.0
  %745 = vmatprep.subr.mxu0 0.0
  %746 = vmatpush1.msra.mxu0 0.0
  %747 = vmatprep.mubr.f32.mxu0 0.0
  %748 = vmatmul.mubr.f32.gmra.mrb[0].mxu0 %v681
  %v749 = vpop.f32.mrb[0].mxu0
  %v750 = vadd.f32 %v678, %v749
  %v751 = vpop.f32.mrb[0].mxu0
  %v752 = vadd.f32 %v678, %v751
  %753 = vdwg.mxu0
  %754 = vmatprep.subr.mxu0 %v671
  %755 = vmatpush1.msra.mxu0 %v670
  %756 = vmatprep.subr.mxu0 0.0
  %757 = vmatpush1.msra.mxu0 0.0
  %758 = vmatprep.subr.mxu0 0.0
  %759 = vmatpush1.msra.mxu0 0.0
  %760 = vmatprep.subr.mxu0 0.0
  %761 = vmatpush1.msra.mxu0 0.0
  %762 = vmatprep.subr.mxu0 0.0
  %763 = vmatpush1.msra.mxu0 0.0
  %764 = vmatprep.subr.mxu0 0.0
  %765 = vmatpush1.msra.mxu0 0.0
  %766 = vmatprep.subr.mxu0 0.0
  %767 = vmatpush1.msra.mxu0 0.0
  %768 = vmatprep.subr.mxu0 0.0
  %769 = vmatpush1.msra.mxu0 0.0
  %770 = vmatprep.subr.mxu0 0.0
  %771 = vmatpush1.msra.mxu0 0.0
  %772 = vmatprep.subr.mxu0 0.0
  %773 = vmatpush1.msra.mxu0 0.0
  %774 = vmatprep.subr.mxu0 0.0
  %775 = vmatpush1.msra.mxu0 0.0
  %776 = vmatprep.subr.mxu0 0.0
  %777 = vmatpush1.msra.mxu0 0.0
  %778 = vmatprep.subr.mxu0 0.0
  %779 = vmatpush1.msra.mxu0 0.0
  %780 = vmatprep.subr.mxu0 0.0
  %781 = vmatpush1.msra.mxu0 0.0
  %782 = vmatprep.subr.mxu0 0.0
  %783 = vmatpush1.msra.mxu0 0.0
  %784 = vmatprep.subr.mxu0 0.0
  %785 = vmatpush1.msra.mxu0 0.0
  %786 = vmatprep.subr.mxu0 0.0
  %787 = vmatpush1.msra.mxu0 0.0
  %788 = vmatprep.subr.mxu0 0.0
  %789 = vmatpush1.msra.mxu0 0.0
  %790 = vmatprep.subr.mxu0 0.0
  %791 = vmatpush1.msra.mxu0 0.0
  %792 = vmatprep.subr.mxu0 0.0
  %793 = vmatpush1.msra.mxu0 0.0
  %794 = vmatprep.subr.mxu0 0.0
  %795 = vmatpush1.msra.mxu0 0.0
  %796 = vmatprep.subr.mxu0 0.0
  %797 = vmatpush1.msra.mxu0 0.0
  %798 = vmatprep.subr.mxu0 0.0
  %799 = vmatpush1.msra.mxu0 0.0
  %800 = vmatprep.subr.mxu0 0.0
  %801 = vmatpush1.msra.mxu0 0.0
  %802 = vmatprep.subr.mxu0 0.0
  %803 = vmatpush1.msra.mxu0 0.0
  %804 = vmatprep.subr.mxu0 0.0
  %805 = vmatpush1.msra.mxu0 0.0
  %806 = vmatprep.subr.mxu0 0.0
  %807 = vmatpush1.msra.mxu0 0.0
  %808 = vmatprep.subr.mxu0 0.0
  %809 = vmatpush1.msra.mxu0 0.0
  %810 = vmatprep.subr.mxu0 0.0
  %811 = vmatpush1.msra.mxu0 0.0
  %812 = vmatprep.subr.mxu0 0.0
  %813 = vmatpush1.msra.mxu0 0.0
  %814 = vmatprep.subr.mxu0 0.0
  %815 = vmatpush1.msra.mxu0 0.0
  %816 = vmatprep.subr.mxu0 0.0
  %817 = vmatpush1.msra.mxu0 0.0
  %818 = vmatprep.mubr.f32.mxu0 0.0
  %819 = vmatmul.mubr.f32.gmra.mrb[0].mxu0 %v681
  %v820 = vpop.f32.mrb[0].mxu0
  %v821 = vadd.f32 %v678, %v820
  %v822 = vpop.f32.mrb[0].mxu0
  %v823 = vadd.f32 %v678, %v822
  %824 = vdwg.mxu0
  %v825 = vmax.f32 %v750, 0.0
  %v826 = vmax.f32 %v752, 0.0
  %v827 = vmax.f32 %v821, 0.0
  %v828 = vmax.f32 %v823, 0.0
  %s829 = scalar_lea.vmem %s5, 8
  %v830 = vld [vmem:[%s829] sm:$0xff]
  %v832 = vsel %vm328, %v830, 0
  %834 = vmatprep.subr.mxu0 %v826
  %835 = vmatpush1.msra.mxu0 %v825
  %836 = vmatprep.subr.mxu0 0.0
  %837 = vmatpush1.msra.mxu0 0.0
  %838 = vmatprep.subr.mxu0 0.0
  %839 = vmatpush1.msra.mxu0 0.0
  %840 = vmatprep.subr.mxu0 0.0
  %841 = vmatpush1.msra.mxu0 0.0
  %842 = vmatprep.subr.mxu0 0.0
  %843 = vmatpush1.msra.mxu0 0.0
  %844 = vmatprep.subr.mxu0 0.0
  %845 = vmatpush1.msra.mxu0 0.0
  %846 = vmatprep.subr.mxu0 0.0
  %847 = vmatpush1.msra.mxu0 0.0
  %848 = vmatprep.subr.mxu0 0.0
  %849 = vmatpush1.msra.mxu0 0.0
  %850 = vmatprep.subr.mxu0 0.0
  %851 = vmatpush1.msra.mxu0 0.0
  %852 = vmatprep.subr.mxu0 0.0
  %853 = vmatpush1.msra.mxu0 0.0
  %854 = vmatprep.subr.mxu0 0.0
  %855 = vmatpush1.msra.mxu0 0.0
  %856 = vmatprep.subr.mxu0 0.0
  %857 = vmatpush1.msra.mxu0 0.0
  %858 = vmatprep.subr.mxu0 0.0
  %859 = vmatpush1.msra.mxu0 0.0
  %860 = vmatprep.subr.mxu0 0.0
  %861 = vmatpush1.msra.mxu0 0.0
  %862 = vmatprep.subr.mxu0 0.0
  %863 = vmatpush1.msra.mxu0 0.0
  %864 = vmatprep.subr.mxu0 0.0
  %865 = vmatpush1.msra.mxu0 0.0
  %866 = vmatprep.subr.mxu0 0.0
  %867 = vmatpush1.msra.mxu0 0.0
  %868 = vmatprep.subr.mxu0 0.0
  %869 = vmatpush1.msra.mxu0 0.0
  %870 = vmatprep.subr.mxu0 0.0
  %871 = vmatpush1.msra.mxu0 0.0
  %872 = vmatprep.subr.mxu0 0.0
  %873 = vmatpush1.msra.mxu0 0.0
  %874 = vmatprep.subr.mxu0 0.0
  %875 = vmatpush1.msra.mxu0 0.0
  %876 = vmatprep.subr.mxu0 0.0
  %877 = vmatpush1.msra.mxu0 0.0
  %878 = vmatprep.subr.mxu0 0.0
  %879 = vmatpush1.msra.mxu0 0.0
  %880 = vmatprep.subr.mxu0 0.0
  %881 = vmatpush1.msra.mxu0 0.0
  %882 = vmatprep.subr.mxu0 0.0
  %883 = vmatpush1.msra.mxu0 0.0
  %884 = vmatprep.subr.mxu0 0.0
  %885 = vmatpush1.msra.mxu0 0.0
  %886 = vmatprep.subr.mxu0 0.0
  %887 = vmatpush1.msra.mxu0 0.0
  %888 = vmatprep.subr.mxu0 0.0
  %889 = vmatpush1.msra.mxu0 0.0
  %890 = vmatprep.subr.mxu0 0.0
  %891 = vmatpush1.msra.mxu0 0.0
  %892 = vmatprep.subr.mxu0 0.0
  %893 = vmatpush1.msra.mxu0 0.0
  %894 = vmatprep.subr.mxu0 0.0
  %895 = vmatpush1.msra.mxu0 0.0
  %896 = vmatprep.subr.mxu0 0.0
  %897 = vmatpush1.msra.mxu0 0.0
  %898 = vmatprep.mubr.f32.mxu0 0.0
  %899 = vmatmul.mubr.f32.gmra.mrb[0].mxu0 %v832
  %v900 = vpop.f32.mrb[0].mxu0
  %v901 = vadd.f32 0.0, %v900
  %v902 = vpop.f32.mrb[0].mxu0
  %v903 = vadd.f32 0.0, %v902
  %904 = vdwg.mxu0
  %905 = vmatprep.subr.mxu0 %v828
  %906 = vmatpush1.msra.mxu0 %v827
  %907 = vmatprep.subr.mxu0 0.0
  %908 = vmatpush1.msra.mxu0 0.0
  %909 = vmatprep.subr.mxu0 0.0
  %910 = vmatpush1.msra.mxu0 0.0
  %911 = vmatprep.subr.mxu0 0.0
  %912 = vmatpush1.msra.mxu0 0.0
  %913 = vmatprep.subr.mxu0 0.0
  %914 = vmatpush1.msra.mxu0 0.0
  %915 = vmatprep.subr.mxu0 0.0
  %916 = vmatpush1.msra.mxu0 0.0
  %917 = vmatprep.subr.mxu0 0.0
  %918 = vmatpush1.msra.mxu0 0.0
  %919 = vmatprep.subr.mxu0 0.0
  %920 = vmatpush1.msra.mxu0 0.0
  %921 = vmatprep.subr.mxu0 0.0
  %922 = vmatpush1.msra.mxu0 0.0
  %923 = vmatprep.subr.mxu0 0.0
  %924 = vmatpush1.msra.mxu0 0.0
  %925 = vmatprep.subr.mxu0 0.0
  %926 = vmatpush1.msra.mxu0 0.0
  %927 = vmatprep.subr.mxu0 0.0
  %928 = vmatpush1.msra.mxu0 0.0
  %929 = vmatprep.subr.mxu0 0.0
  %930 = vmatpush1.msra.mxu0 0.0
  %931 = vmatprep.subr.mxu0 0.0
  %932 = vmatpush1.msra.mxu0 0.0
  %933 = vmatprep.subr.mxu0 0.0
  %934 = vmatpush1.msra.mxu0 0.0
  %935 = vmatprep.subr.mxu0 0.0
  %936 = vmatpush1.msra.mxu0 0.0
  %937 = vmatprep.subr.mxu0 0.0
  %938 = vmatpush1.msra.mxu0 0.0
  %939 = vmatprep.subr.mxu0 0.0
  %940 = vmatpush1.msra.mxu0 0.0
  %941 = vmatprep.subr.mxu0 0.0
  %942 = vmatpush1.msra.mxu0 0.0
  %943 = vmatprep.subr.mxu0 0.0
  %944 = vmatpush1.msra.mxu0 0.0
  %945 = vmatprep.subr.mxu0 0.0
  %946 = vmatpush1.msra.mxu0 0.0
  %947 = vmatprep.subr.mxu0 0.0
  %948 = vmatpush1.msra.mxu0 0.0
  %949 = vmatprep.subr.mxu0 0.0
  %950 = vmatpush1.msra.mxu0 0.0
  %951 = vmatprep.subr.mxu0 0.0
  %952 = vmatpush1.msra.mxu0 0.0
  %953 = vmatprep.subr.mxu0 0.0
  %954 = vmatpush1.msra.mxu0 0.0
  %955 = vmatprep.subr.mxu0 0.0
  %956 = vmatpush1.msra.mxu0 0.0
  %957 = vmatprep.subr.mxu0 0.0
  %958 = vmatpush1.msra.mxu0 0.0
  %959 = vmatprep.subr.mxu0 0.0
  %960 = vmatpush1.msra.mxu0 0.0
  %961 = vmatprep.subr.mxu0 0.0
  %962 = vmatpush1.msra.mxu0 0.0
  %963 = vmatprep.subr.mxu0 0.0
  %964 = vmatpush1.msra.mxu0 0.0
  %965 = vmatprep.subr.mxu0 0.0
  %966 = vmatpush1.msra.mxu0 0.0
  %967 = vmatprep.subr.mxu0 0.0
  %968 = vmatpush1.msra.mxu0 0.0
  %969 = vmatprep.mubr.f32.mxu0 0.0
  %970 = vmatmul.mubr.f32.gmra.mrb[0].mxu0 %v832
  %v971 = vpop.f32.mrb[0].mxu0
  %v972 = vadd.f32 0.0, %v971
  %v973 = vpop.f32.mrb[0].mxu0
  %v974 = vadd.f32 0.0, %v973
  %975 = vdwg.mxu0
  %s976 = scalar_lea.vmem %s6, 16
  %v977 = vld [vmem:[%s976] sm:$0xff]
  %s978 = scalar_lea.vmem %s6, 24
  %v979 = vld [vmem:[%s978] sm:$0xff]
  %v980 = vrot.slane %v901, 4
  %v981 = vadd.f32 %v901, %v980
  %v982 = vrot.slane %v981, 2
  %v983 = vadd.f32 %v981, %v982
  %v984 = vrot.slane %v983, 1
  %v985 = vadd.f32 %v983, %v984
  %v986 = vrot.slane %v903, 4
  %v987 = vadd.f32 %v903, %v986
  %v988 = vrot.slane %v987, 2
  %v989 = vadd.f32 %v987, %v988
  %v990 = vrot.slane %v989, 1
  %v991 = vadd.f32 %v989, %v990
  %v992 = vrot.slane %v972, 4
  %v993 = vadd.f32 %v972, %v992
  %v994 = vrot.slane %v993, 2
  %v995 = vadd.f32 %v993, %v994
  %v996 = vrot.slane %v995, 1
  %v997 = vadd.f32 %v995, %v996
  %v998 = vrot.slane %v974, 4
  %v999 = vadd.f32 %v974, %v998
  %v1000 = vrot.slane %v999, 2
  %v1001 = vadd.f32 %v999, %v1000
  %v1002 = vrot.slane %v1001, 1
  %v1003 = vadd.f32 %v1001, %v1002
  %v1004 = vrcp.pop 8.0
  %v1005 = vmul.f32 %v985, %v1004
  %v1006 = vmul.f32 %v991, %v1004
  %v1007 = vmul.f32 %v997, %v1004
  %v1008 = vmul.f32 %v1003, %v1004
  %v1009 = vsub.f32 %v901, %v1005
  %v1010 = vsub.f32 %v903, %v1006
  %v1011 = vsub.f32 %v972, %v1007
  %v1012 = vsub.f32 %v974, %v1008
  %v1013 = vmul.f32 %v1009, %v1009
  %v1014 = vmul.f32 %v1010, %v1010
  %v1015 = vmul.f32 %v1011, %v1011
  %v1016 = vmul.f32 %v1012, %v1012
  %v1017 = vrot.slane %v1013, 4
  %v1018 = vadd.f32 %v1013, %v1017
  %v1019 = vrot.slane %v1018, 2
  %v1020 = vadd.f32 %v1018, %v1019
  %v1021 = vrot.slane %v1020, 1
  %v1022 = vadd.f32 %v1020, %v1021
  %v1023 = vrot.slane %v1014, 4
  %v1024 = vadd.f32 %v1014, %v1023
  %v1025 = vrot.slane %v1024, 2
  %v1026 = vadd.f32 %v1024, %v1025
  %v1027 = vrot.slane %v1026, 1
  %v1028 = vadd.f32 %v1026, %v1027
  %v1029 = vrot.slane %v1015, 4
  %v1030 = vadd.f32 %v1015, %v1029
  %v1031 = vrot.slane %v1030, 2
  %v1032 = vadd.f32 %v1030, %v1031
  %v1033 = vrot.slane %v1032, 1
  %v1034 = vadd.f32 %v1032, %v1033
  %v1035 = vrot.slane %v1016, 4
  %v1036 = vadd.f32 %v1016, %v1035
  %v1037 = vrot.slane %v1036, 2
  %v1038 = vadd.f32 %v1036, %v1037
  %v1039 = vrot.slane %v1038, 1
  %v1040 = vadd.f32 %v1038, %v1039
  %v1041 = vmul.f32 %v1022, %v1004
  %v1042 = vmul.f32 %v1028, %v1004
  %v1043 = vmul.f32 %v1034, %v1004
  %v1044 = vmul.f32 %v1040, %v1004
  %v1045 = vadd.f32 %v1041, 1e-05
  %v1046 = vadd.f32 %v1042, 1e-05
  %v1047 = vadd.f32 %v1043, 1e-05
  %v1048 = vadd.f32 %v1044, 1e-05
  %v1049 = vrsqrt.pop %v1045
  %v1050 = vrsqrt.pop %v1046
  %v1051 = vrsqrt.pop %v1047
  %v1052 = vrsqrt.pop %v1048
  %v1053 = vmul.f32 %v1009, %v1049
  %v1054 = vmul.f32 %v1010, %v1050
  %v1055 = vmul.f32 %v1011, %v1051
  %v1056 = vmul.f32 %v1012, %v1052
  %1058 = vset.pattern.permute.xlu0 0
  %1059 = vperm.xlu0 %1058, %v977
  %v1060 = vpop.permute.xlu0 %1059
  %v1062 = vmul.f32 %v1053, %v1060
  %v1063 = vmul.f32 %v1054, %v1060
  %v1064 = vmul.f32 %v1055, %v1060
  %v1065 = vmul.f32 %v1056, %v1060
  %1067 = vset.pattern.permute.xlu0 0
  %1068 = vperm.xlu0 %1067, %v979
  %v1069 = vpop.permute.xlu0 %1068
  %v1071 = vadd.f32 %v1062, %v1069
  %v1072 = vadd.f32 %v1063, %v1069
  %v1073 = vadd.f32 %v1064, %v1069
  %v1074 = vadd.f32 %v1065, %v1069
  %s1075 = scalar_lea.vmem %s6, 32
  %v1076 = vld [vmem:[%s1075] sm:$0xff]
  %s1077 = scalar_lea.vmem %s6, 40
  %v1078 = vld [vmem:[%s1077] sm:$0xff]
  %v1079 = vrot.slane %v1071, 4
  %v1080 = vadd.f32 %v1071, %v1079
  %v1081 = vrot.slane %v1080, 2
  %v1082 = vadd.f32 %v1080, %v1081
  %v1083 = vrot.slane %v1082, 1
  %v1084 = vadd.f32 %v1082, %v1083
  %v1085 = vrot.slane %v1072, 4
  %v1086 = vadd.f32 %v1072, %v1085
  %v1087 = vrot.slane %v1086, 2
  %v1088 = vadd.f32 %v1086, %v1087
  %v1089 = vrot.slane %v1088, 1
  %v1090 = vadd.f32 %v1088, %v1089
  %v1091 = vrot.slane %v1073, 4
  %v1092 = vadd.f32 %v1073, %v1091
  %v1093 = vrot.slane %v1092, 2
  %v1094 = vadd.f32 %v1092, %v1093
  %v1095 = vrot.slane %v1094, 1
  %v1096 = vadd.f32 %v1094, %v1095
  %v1097 = vrot.slane %v1074, 4
  %v1098 = vadd.f32 %v1074, %v1097
  %v1099 = vrot.slane %v1098, 2
  %v1100 = vadd.f32 %v1098, %v1099
  %v1101 = vrot.slane %v1100, 1
  %v1102 = vadd.f32 %v1100, %v1101
  %v1103 = vmul.f32 %v1084, %v1004
  %v1104 = vmul.f32 %v1090, %v1004
  %v1105 = vmul.f32 %v1096, %v1004
  %v1106 = vmul.f32 %v1102, %v1004
  %v1107 = vsub.f32 %v1071, %v1103
  %v1108 = vsub.f32 %v1072, %v1104
  %v1109 = vsub.f32 %v1073, %v1105
  %v1110 = vsub.f32 %v1074, %v1106
  %v1111 = vmul.f32 %v1107, %v1107
  %v1112 = vmul.f32 %v1108, %v1108
  %v1113 = vmul.f32 %v1109, %v1109
  %v1114 = vmul.f32 %v1110, %v1110
  %v1115 = vrot.slane %v1111, 4
  %v1116 = vadd.f32 %v1111, %v1115
  %v1117 = vrot.slane %v1116, 2
  %v1118 = vadd.f32 %v1116, %v1117
  %v1119 = vrot.slane %v1118, 1
  %v1120 = vadd.f32 %v1118, %v1119
  %v1121 = vrot.slane %v1112, 4
  %v1122 = vadd.f32 %v1112, %v1121
  %v1123 = vrot.slane %v1122, 2
  %v1124 = vadd.f32 %v1122, %v1123
  %v1125 = vrot.slane %v1124, 1
  %v1126 = vadd.f32 %v1124, %v1125
  %v1127 = vrot.slane %v1113, 4
  %v1128 = vadd.f32 %v1113, %v1127
  %v1129 = vrot.slane %v1128, 2
  %v1130 = vadd.f32 %v1128, %v1129
  %v1131 = vrot.slane %v1130, 1
  %v1132 = vadd.f32 %v1130, %v1131
  %v1133 = vrot.slane %v1114, 4
  %v1134 = vadd.f32 %v1114, %v1133
  %v1135 = vrot.slane %v1134, 2
  %v1136 = vadd.f32 %v1134, %v1135
  %v1137 = vrot.slane %v1136, 1
  %v1138 = vadd.f32 %v1136, %v1137
  %v1139 = vmul.f32 %v1120, %v1004
  %v1140 = vmul.f32 %v1126, %v1004
  %v1141 = vmul.f32 %v1132, %v1004
  %v1142 = vmul.f32 %v1138, %v1004
  %v1143 = vadd.f32 %v1139, 1e-05
  %v1144 = vadd.f32 %v1140, 1e-05
  %v1145 = vadd.f32 %v1141, 1e-05
  %v1146 = vadd.f32 %v1142, 1e-05
  %v1147 = vrsqrt.pop %v1143
  %v1148 = vrsqrt.pop %v1144
  %v1149 = vrsqrt.pop %v1145
  %v1150 = vrsqrt.pop %v1146
  %v1151 = vmul.f32 %v1107, %v1147
  %v1152 = vmul.f32 %v1108, %v1148
  %v1153 = vmul.f32 %v1109, %v1149
  %v1154 = vmul.f32 %v1110, %v1150
  %1156 = vset.pattern.permute.xlu0 0
  %1157 = vperm.xlu0 %1156, %v1076
  %v1158 = vpop.permute.xlu0 %1157
  %v1160 = vmul.f32 %v1151, %v1158
  %v1161 = vmul.f32 %v1152, %v1158
  %v1162 = vmul.f32 %v1153, %v1158
  %v1163 = vmul.f32 %v1154, %v1158
  %1165 = vset.pattern.permute.xlu0 0
  %1166 = vperm.xlu0 %1165, %v1078
  %v1167 = vpop.permute.xlu0 %1166
  %v1169 = vadd.f32 %v1160, %v1167
  %v1170 = vadd.f32 %v1161, %v1167
  %v1171 = vadd.f32 %v1162, %v1167
  %v1172 = vadd.f32 %v1163, %v1167
  %s1173 = scalar_lea.vmem %s5, 16
  %v1174 = vld [vmem:[%s1173] sm:$0xff]
  %s1175 = scalar_lea.vmem %s6, 48
  %v1176 = vld [vmem:[%s1175] sm:$0xff]
  %1178 = vset.pattern.permute.xlu0 0
  %1179 = vperm.xlu0 %1178, %v1176
  %v1180 = vpop.permute.xlu0 %1179
  %v1183 = vsel %vm328, %v1174, 0
  %1185 = vmatprep.subr.mxu0 %v1170
  %1186 = vmatpush1.msra.mxu0 %v1169
  %1187 = vmatprep.subr.mxu0 0.0
  %1188 = vmatpush1.msra.mxu0 0.0
  %1189 = vmatprep.subr.mxu0 0.0
  %1190 = vmatpush1.msra.mxu0 0.0
  %1191 = vmatprep.subr.mxu0 0.0
  %1192 = vmatpush1.msra.mxu0 0.0
  %1193 = vmatprep.subr.mxu0 0.0
  %1194 = vmatpush1.msra.mxu0 0.0
  %1195 = vmatprep.subr.mxu0 0.0
  %1196 = vmatpush1.msra.mxu0 0.0
  %1197 = vmatprep.subr.mxu0 0.0
  %1198 = vmatpush1.msra.mxu0 0.0
  %1199 = vmatprep.subr.mxu0 0.0
  %1200 = vmatpush1.msra.mxu0 0.0
  %1201 = vmatprep.subr.mxu0 0.0
  %1202 = vmatpush1.msra.mxu0 0.0
  %1203 = vmatprep.subr.mxu0 0.0
  %1204 = vmatpush1.msra.mxu0 0.0
  %1205 = vmatprep.subr.mxu0 0.0
  %1206 = vmatpush1.msra.mxu0 0.0
  %1207 = vmatprep.subr.mxu0 0.0
  %1208 = vmatpush1.msra.mxu0 0.0
  %1209 = vmatprep.subr.mxu0 0.0
  %1210 = vmatpush1.msra.mxu0 0.0
  %1211 = vmatprep.subr.mxu0 0.0
  %1212 = vmatpush1.msra.mxu0 0.0
  %1213 = vmatprep.subr.mxu0 0.0
  %1214 = vmatpush1.msra.mxu0 0.0
  %1215 = vmatprep.subr.mxu0 0.0
  %1216 = vmatpush1.msra.mxu0 0.0
  %1217 = vmatprep.subr.mxu0 0.0
  %1218 = vmatpush1.msra.mxu0 0.0
  %1219 = vmatprep.subr.mxu0 0.0
  %1220 = vmatpush1.msra.mxu0 0.0
  %1221 = vmatprep.subr.mxu0 0.0
  %1222 = vmatpush1.msra.mxu0 0.0
  %1223 = vmatprep.subr.mxu0 0.0
  %1224 = vmatpush1.msra.mxu0 0.0
  %1225 = vmatprep.subr.mxu0 0.0
  %1226 = vmatpush1.msra.mxu0 0.0
  %1227 = vmatprep.subr.mxu0 0.0
  %1228 = vmatpush1.msra.mxu0 0.0
  %1229 = vmatprep.subr.mxu0 0.0
  %1230 = vmatpush1.msra.mxu0 0.0
  %1231 = vmatprep.subr.mxu0 0.0
  %1232 = vmatpush1.msra.mxu0 0.0
  %1233 = vmatprep.subr.mxu0 0.0
  %1234 = vmatpush1.msra.mxu0 0.0
  %1235 = vmatprep.subr.mxu0 0.0
  %1236 = vmatpush1.msra.mxu0 0.0
  %1237 = vmatprep.subr.mxu0 0.0
  %1238 = vmatpush1.msra.mxu0 0.0
  %1239 = vmatprep.subr.mxu0 0.0
  %1240 = vmatpush1.msra.mxu0 0.0
  %1241 = vmatprep.subr.mxu0 0.0
  %1242 = vmatpush1.msra.mxu0 0.0
  %1243 = vmatprep.subr.mxu0 0.0
  %1244 = vmatpush1.msra.mxu0 0.0
  %1245 = vmatprep.subr.mxu0 0.0
  %1246 = vmatpush1.msra.mxu0 0.0
  %1247 = vmatprep.subr.mxu0 0.0
  %1248 = vmatpush1.msra.mxu0 0.0
  %1249 = vmatprep.mubr.f32.mxu0 0.0
  %1250 = vmatmul.mubr.f32.gmra.mrb[0].mxu0 %v1183
  %v1251 = vpop.f32.mrb[0].mxu0
  %v1252 = vadd.f32 %v1180, %v1251
  %v1253 = vpop.f32.mrb[0].mxu0
  %v1254 = vadd.f32 %v1180, %v1253
  %1255 = vdwg.mxu0
  %1256 = vmatprep.subr.mxu0 %v1172
  %1257 = vmatpush1.msra.mxu0 %v1171
  %1258 = vmatprep.subr.mxu0 0.0
  %1259 = vmatpush1.msra.mxu0 0.0
  %1260 = vmatprep.subr.mxu0 0.0
  %1261 = vmatpush1.msra.mxu0 0.0
  %1262 = vmatprep.subr.mxu0 0.0
  %1263 = vmatpush1.msra.mxu0 0.0
  %1264 = vmatprep.subr.mxu0 0.0
  %1265 = vmatpush1.msra.mxu0 0.0
  %1266 = vmatprep.subr.mxu0 0.0
  %1267 = vmatpush1.msra.mxu0 0.0
  %1268 = vmatprep.subr.mxu0 0.0
  %1269 = vmatpush1.msra.mxu0 0.0
  %1270 = vmatprep.subr.mxu0 0.0
  %1271 = vmatpush1.msra.mxu0 0.0
  %1272 = vmatprep.subr.mxu0 0.0
  %1273 = vmatpush1.msra.mxu0 0.0
  %1274 = vmatprep.subr.mxu0 0.0
  %1275 = vmatpush1.msra.mxu0 0.0
  %1276 = vmatprep.subr.mxu0 0.0
  %1277 = vmatpush1.msra.mxu0 0.0
  %1278 = vmatprep.subr.mxu0 0.0
  %1279 = vmatpush1.msra.mxu0 0.0
  %1280 = vmatprep.subr.mxu0 0.0
  %1281 = vmatpush1.msra.mxu0 0.0
  %1282 = vmatprep.subr.mxu0 0.0
  %1283 = vmatpush1.msra.mxu0 0.0
  %1284 = vmatprep.subr.mxu0 0.0
  %1285 = vmatpush1.msra.mxu0 0.0
  %1286 = vmatprep.subr.mxu0 0.0
  %1287 = vmatpush1.msra.mxu0 0.0
  %1288 = vmatprep.subr.mxu0 0.0
  %1289 = vmatpush1.msra.mxu0 0.0
  %1290 = vmatprep.subr.mxu0 0.0
  %1291 = vmatpush1.msra.mxu0 0.0
  %1292 = vmatprep.subr.mxu0 0.0
  %1293 = vmatpush1.msra.mxu0 0.0
  %1294 = vmatprep.subr.mxu0 0.0
  %1295 = vmatpush1.msra.mxu0 0.0
  %1296 = vmatprep.subr.mxu0 0.0
  %1297 = vmatpush1.msra.mxu0 0.0
  %1298 = vmatprep.subr.mxu0 0.0
  %1299 = vmatpush1.msra.mxu0 0.0
  %1300 = vmatprep.subr.mxu0 0.0
  %1301 = vmatpush1.msra.mxu0 0.0
  %1302 = vmatprep.subr.mxu0 0.0
  %1303 = vmatpush1.msra.mxu0 0.0
  %1304 = vmatprep.subr.mxu0 0.0
  %1305 = vmatpush1.msra.mxu0 0.0
  %1306 = vmatprep.subr.mxu0 0.0
  %1307 = vmatpush1.msra.mxu0 0.0
  %1308 = vmatprep.subr.mxu0 0.0
  %1309 = vmatpush1.msra.mxu0 0.0
  %1310 = vmatprep.subr.mxu0 0.0
  %1311 = vmatpush1.msra.mxu0 0.0
  %1312 = vmatprep.subr.mxu0 0.0
  %1313 = vmatpush1.msra.mxu0 0.0
  %1314 = vmatprep.subr.mxu0 0.0
  %1315 = vmatpush1.msra.mxu0 0.0
  %1316 = vmatprep.subr.mxu0 0.0
  %1317 = vmatpush1.msra.mxu0 0.0
  %1318 = vmatprep.subr.mxu0 0.0
  %1319 = vmatpush1.msra.mxu0 0.0
  %1320 = vmatprep.mubr.f32.mxu0 0.0
  %1321 = vmatmul.mubr.f32.gmra.mrb[0].mxu0 %v1183
  %v1322 = vpop.f32.mrb[0].mxu0
  %v1323 = vadd.f32 %v1180, %v1322
  %v1324 = vpop.f32.mrb[0].mxu0
  %v1325 = vadd.f32 %v1180, %v1324
  %1326 = vdwg.mxu0
  %1327 = vrot.lane.b32.xlu0 %v1252, 16
  %v1328 = vpop.permute.xlu0 %1327
  %1329 = vrot.lane.b32.xlu0 %v1254, 16
  %v1330 = vpop.permute.xlu0 %1329
  %1331 = vrot.lane.b32.xlu0 %v1323, 16
  %v1332 = vpop.permute.xlu0 %1331
  %1333 = vrot.lane.b32.xlu0 %v1325, 16
  %v1334 = vpop.permute.xlu0 %1333
  %v1335 = vsel %vm131, %v1332, %v1334
  %v1336 = vsel %vm131, %v1330, %v1332
  %v1337 = vsel %vm131, %v1328, %v1330
  %v1338 = vsel %vm131, %v1334, %v1328
  %v1339 = vmul.f32 %v31, %v1338
  %v1340 = vmul.f32 %v35, %v1337
  %v1341 = vmul.f32 %v39, %v1336
  %v1342 = vmul.f32 %v43, %v1335
  %1343 = vrot.lane.b32.xlu0 %v1252, 112
  %v1344 = vpop.permute.xlu0 %1343
  %1345 = vrot.lane.b32.xlu0 %v1254, 112
  %v1346 = vpop.permute.xlu0 %1345
  %1347 = vrot.lane.b32.xlu0 %v1323, 112
  %v1348 = vpop.permute.xlu0 %1347
  %1349 = vrot.lane.b32.xlu0 %v1325, 112
  %v1350 = vpop.permute.xlu0 %1349
  %v1351 = vsel %vm148, %v1348, %v1350
  %v1352 = vsel %vm148, %v1346, %v1348
  %v1353 = vsel %vm148, %v1344, %v1346
  %v1354 = vsel %vm148, %v1350, %v1344
  %v1355 = vmul.f32 %v54, %v1353
  %v1356 = vmul.f32 %v58, %v1352
  %v1357 = vmul.f32 %v62, %v1351
  %v1358 = vmul.f32 %v66, %v1354
  %s1359 = scalar_lea.vmem %s4, 72
  %v1360 = vld [vmem:[%s1359] sm:$0xff]
  %1362 = vset.pattern.permute.xlu0 0
  %1363 = vperm.xlu0 %1362, %v1360
  %v1364 = vpop.permute.xlu0 %1363
  %v1366 = vmul.f32 %v1364, %v1339
  %v1367 = vmul.f32 %v1364, %v1340
  %v1368 = vmul.f32 %v1364, %v1341
  %v1369 = vmul.f32 %v1364, %v1342
  %s1370 = scalar_lea.vmem %s4, 96
  %v1371 = vld [vmem:[%s1370] sm:$0xff]
  %1373 = vset.pattern.permute.xlu0 0
  %1374 = vperm.xlu0 %1373, %v1371
  %v1375 = vpop.permute.xlu0 %1374
  %v1377 = vmul.f32 %v1375, %v1252
  %v1378 = vmul.f32 %v1375, %v1254
  %v1379 = vmul.f32 %v1375, %v1323
  %v1380 = vmul.f32 %v1375, %v1325
  %v1381 = vadd.f32 %v1366, %v1377
  %v1382 = vadd.f32 %v1367, %v1378
  %v1383 = vadd.f32 %v1368, %v1379
  %v1384 = vadd.f32 %v1369, %v1380
  %s1385 = scalar_lea.vmem %s4, 120
  %v1386 = vld [vmem:[%s1385] sm:$0xff]
  %1388 = vset.pattern.permute.xlu0 0
  %1389 = vperm.xlu0 %1388, %v1386
  %v1390 = vpop.permute.xlu0 %1389
  %v1392 = vmul.f32 %v1390, %v1355
  %v1393 = vmul.f32 %v1390, %v1356
  %v1394 = vmul.f32 %v1390, %v1357
  %v1395 = vmul.f32 %v1390, %v1358
  %v1396 = vadd.f32 %v1381, %v1392
  %v1397 = vadd.f32 %v1382, %v1393
  %v1398 = vadd.f32 %v1383, %v1394
  %v1399 = vadd.f32 %v1384, %v1395
  %s1400 = scalar_lea.vmem %s4, 80
  %v1401 = vld [vmem:[%s1400] sm:$0xff]
  %1403 = vset.pattern.permute.xlu0 0
  %1404 = vperm.xlu0 %1403, %v1401
  %v1405 = vpop.permute.xlu0 %1404
  %v1407 = vmul.f32 %v1405, %v1339
  %v1408 = vmul.f32 %v1405, %v1340
  %v1409 = vmul.f32 %v1405, %v1341
  %v1410 = vmul.f32 %v1405, %v1342
  %s1411 = scalar_lea.vmem %s4, 104
  %v1412 = vld [vmem:[%s1411] sm:$0xff]
  %1414 = vset.pattern.permute.xlu0 0
  %1415 = vperm.xlu0 %1414, %v1412
  %v1416 = vpop.permute.xlu0 %1415
  %v1418 = vmul.f32 %v1416, %v1252
  %v1419 = vmul.f32 %v1416, %v1254
  %v1420 = vmul.f32 %v1416, %v1323
  %v1421 = vmul.f32 %v1416, %v1325
  %v1422 = vadd.f32 %v1407, %v1418
  %v1423 = vadd.f32 %v1408, %v1419
  %v1424 = vadd.f32 %v1409, %v1420
  %v1425 = vadd.f32 %v1410, %v1421
  %s1426 = scalar_lea.vmem %s4, 128
  %v1427 = vld [vmem:[%s1426] sm:$0xff]
  %1429 = vset.pattern.permute.xlu0 0
  %1430 = vperm.xlu0 %1429, %v1427
  %v1431 = vpop.permute.xlu0 %1430
  %v1433 = vmul.f32 %v1431, %v1355
  %v1434 = vmul.f32 %v1431, %v1356
  %v1435 = vmul.f32 %v1431, %v1357
  %v1436 = vmul.f32 %v1431, %v1358
  %v1437 = vadd.f32 %v1422, %v1433
  %v1438 = vadd.f32 %v1423, %v1434
  %v1439 = vadd.f32 %v1424, %v1435
  %v1440 = vadd.f32 %v1425, %v1436
  %s1441 = scalar_lea.vmem %s4, 88
  %v1442 = vld [vmem:[%s1441] sm:$0xff]
  %1444 = vset.pattern.permute.xlu0 0
  %1445 = vperm.xlu0 %1444, %v1442
  %v1446 = vpop.permute.xlu0 %1445
  %v1448 = vmul.f32 %v1446, %v1339
  %v1449 = vmul.f32 %v1446, %v1340
  %v1450 = vmul.f32 %v1446, %v1341
  %v1451 = vmul.f32 %v1446, %v1342
  %s1452 = scalar_lea.vmem %s4, 112
  %v1453 = vld [vmem:[%s1452] sm:$0xff]
  %1455 = vset.pattern.permute.xlu0 0
  %1456 = vperm.xlu0 %1455, %v1453
  %v1457 = vpop.permute.xlu0 %1456
  %v1459 = vmul.f32 %v1457, %v1252
  %v1460 = vmul.f32 %v1457, %v1254
  %v1461 = vmul.f32 %v1457, %v1323
  %v1462 = vmul.f32 %v1457, %v1325
  %v1463 = vadd.f32 %v1448, %v1459
  %v1464 = vadd.f32 %v1449, %v1460
  %v1465 = vadd.f32 %v1450, %v1461
  %v1466 = vadd.f32 %v1451, %v1462
  %s1467 = scalar_lea.vmem %s4, 136
  %v1468 = vld [vmem:[%s1467] sm:$0xff]
  %1470 = vset.pattern.permute.xlu0 0
  %1471 = vperm.xlu0 %1470, %v1468
  %v1472 = vpop.permute.xlu0 %1471
  %v1474 = vmul.f32 %v1472, %v1355
  %v1475 = vmul.f32 %v1472, %v1356
  %v1476 = vmul.f32 %v1472, %v1357
  %v1477 = vmul.f32 %v1472, %v1358
  %v1478 = vadd.f32 %v1463, %v1474
  %v1479 = vadd.f32 %v1464, %v1475
  %v1480 = vadd.f32 %v1465, %v1476
  %v1481 = vadd.f32 %v1466, %v1477
  %1482 = vrot.lane.b32.xlu0 %v1396, 1
  %v1483 = vpop.permute.xlu0 %1482
  %1484 = vrot.lane.b32.xlu0 %v1397, 1
  %v1485 = vpop.permute.xlu0 %1484
  %1486 = vrot.lane.b32.xlu0 %v1398, 1
  %v1487 = vpop.permute.xlu0 %1486
  %1488 = vrot.lane.b32.xlu0 %v1399, 1
  %v1489 = vpop.permute.xlu0 %1488
  %v1490 = vsel %vm287, %v1487, %v1489
  %v1491 = vsel %vm287, %v1485, %v1487
  %v1492 = vsel %vm287, %v1483, %v1485
  %v1493 = vsel %vm287, %v1489, %v1483
  %v1494 = vmul.f32 %v77, %v1493
  %v1495 = vmul.f32 %v81, %v1492
  %v1496 = vmul.f32 %v85, %v1491
  %v1497 = vmul.f32 %v89, %v1490
  %v1498 = vadd.f32 %v1494, %v1437
  %v1499 = vadd.f32 %v1495, %v1438
  %v1500 = vadd.f32 %v1496, %v1439
  %v1501 = vadd.f32 %v1497, %v1440
  %1502 = vrot.lane.b32.xlu0 %v1478, 127
  %v1503 = vpop.permute.xlu0 %1502
  %1504 = vrot.lane.b32.xlu0 %v1479, 127
  %v1505 = vpop.permute.xlu0 %1504
  %1506 = vrot.lane.b32.xlu0 %v1480, 127
  %v1507 = vpop.permute.xlu0 %1506
  %1508 = vrot.lane.b32.xlu0 %v1481, 127
  %v1509 = vpop.permute.xlu0 %1508
  %v1510 = vsel %vm308, %v1507, %v1509
  %v1511 = vsel %vm308, %v1505, %v1507
  %v1512 = vsel %vm308, %v1503, %v1505
  %v1513 = vsel %vm308, %v1509, %v1503
  %v1514 = vmul.f32 %v100, %v1512
  %v1515 = vmul.f32 %v104, %v1511
  %v1516 = vmul.f32 %v108, %v1510
  %v1517 = vmul.f32 %v112, %v1513
  %v1518 = vadd.f32 %v1498, %v1514
  %v1519 = vadd.f32 %v1499, %v1515
  %v1520 = vadd.f32 %v1500, %v1516
  %v1521 = vadd.f32 %v1501, %v1517
  %s1522 = scalar_lea.vmem %s6, 56
  %v1523 = vld [vmem:[%s1522] sm:$0xff]
  %1525 = vset.pattern.permute.xlu0 0
  %1526 = vperm.xlu0 %1525, %v1523
  %v1527 = vpop.permute.xlu0 %1526
  %v1529 = vadd.f32 %v1518, %v1527
  %v1530 = vadd.f32 %v1519, %v1527
  %v1531 = vadd.f32 %v1520, %v1527
  %v1532 = vadd.f32 %v1521, %v1527
  %v1533 = vmax.f32 %v1529, 0.0
  %v1534 = vmax.f32 %v1530, 0.0
  %v1535 = vmax.f32 %v1531, 0.0
  %v1536 = vmax.f32 %v1532, 0.0
  %s1537 = scalar_lea.vmem %s5, 24
  %v1538 = vld [vmem:[%s1537] sm:$0xff]
  %s1539 = scalar_lea.vmem %s6, 64
  %v1540 = vld [vmem:[%s1539] sm:$0xff]
  %1542 = vset.pattern.permute.xlu0 0
  %1543 = vperm.xlu0 %1542, %v1540
  %v1544 = vpop.permute.xlu0 %1543
  %v1547 = vsel %vm328, %v1538, 0
  %1549 = vmatprep.subr.mxu0 %v1534
  %1550 = vmatpush1.msra.mxu0 %v1533
  %1551 = vmatprep.subr.mxu0 0.0
  %1552 = vmatpush1.msra.mxu0 0.0
  %1553 = vmatprep.subr.mxu0 0.0
  %1554 = vmatpush1.msra.mxu0 0.0
  %1555 = vmatprep.subr.mxu0 0.0
  %1556 = vmatpush1.msra.mxu0 0.0
  %1557 = vmatprep.subr.mxu0 0.0
  %1558 = vmatpush1.msra.mxu0 0.0
  %1559 = vmatprep.subr.mxu0 0.0
  %1560 = vmatpush1.msra.mxu0 0.0
  %1561 = vmatprep.subr.mxu0 0.0
  %1562 = vmatpush1.msra.mxu0 0.0
  %1563 = vmatprep.subr.mxu0 0.0
  %1564 = vmatpush1.msra.mxu0 0.0
  %1565 = vmatprep.subr.mxu0 0.0
  %1566 = vmatpush1.msra.mxu0 0.0
  %1567 = vmatprep.subr.mxu0 0.0
  %1568 = vmatpush1.msra.mxu0 0.0
  %1569 = vmatprep.subr.mxu0 0.0
  %1570 = vmatpush1.msra.mxu0 0.0
  %1571 = vmatprep.subr.mxu0 0.0
  %1572 = vmatpush1.msra.mxu0 0.0
  %1573 = vmatprep.subr.mxu0 0.0
  %1574 = vmatpush1.msra.mxu0 0.0
  %1575 = vmatprep.subr.mxu0 0.0
  %1576 = vmatpush1.msra.mxu0 0.0
  %1577 = vmatprep.subr.mxu0 0.0
  %1578 = vmatpush1.msra.mxu0 0.0
  %1579 = vmatprep.subr.mxu0 0.0
  %1580 = vmatpush1.msra.mxu0 0.0
  %1581 = vmatprep.subr.mxu0 0.0
  %1582 = vmatpush1.msra.mxu0 0.0
  %1583 = vmatprep.subr.mxu0 0.0
  %1584 = vmatpush1.msra.mxu0 0.0
  %1585 = vmatprep.subr.mxu0 0.0
  %1586 = vmatpush1.msra.mxu0 0.0
  %1587 = vmatprep.subr.mxu0 0.0
  %1588 = vmatpush1.msra.mxu0 0.0
  %1589 = vmatprep.subr.mxu0 0.0
  %1590 = vmatpush1.msra.mxu0 0.0
  %1591 = vmatprep.subr.mxu0 0.0
  %1592 = vmatpush1.msra.mxu0 0.0
  %1593 = vmatprep.subr.mxu0 0.0
  %1594 = vmatpush1.msra.mxu0 0.0
  %1595 = vmatprep.subr.mxu0 0.0
  %1596 = vmatpush1.msra.mxu0 0.0
  %1597 = vmatprep.subr.mxu0 0.0
  %1598 = vmatpush1.msra.mxu0 0.0
  %1599 = vmatprep.subr.mxu0 0.0
  %1600 = vmatpush1.msra.mxu0 0.0
  %1601 = vmatprep.subr.mxu0 0.0
  %1602 = vmatpush1.msra.mxu0 0.0
  %1603 = vmatprep.subr.mxu0 0.0
  %1604 = vmatpush1.msra.mxu0 0.0
  %1605 = vmatprep.subr.mxu0 0.0
  %1606 = vmatpush1.msra.mxu0 0.0
  %1607 = vmatprep.subr.mxu0 0.0
  %1608 = vmatpush1.msra.mxu0 0.0
  %1609 = vmatprep.subr.mxu0 0.0
  %1610 = vmatpush1.msra.mxu0 0.0
  %1611 = vmatprep.subr.mxu0 0.0
  %1612 = vmatpush1.msra.mxu0 0.0
  %1613 = vmatprep.mubr.f32.mxu0 0.0
  %1614 = vmatmul.mubr.f32.gmra.mrb[0].mxu0 %v1547
  %v1615 = vpop.f32.mrb[0].mxu0
  %v1616 = vadd.f32 %v1544, %v1615
  %v1617 = vpop.f32.mrb[0].mxu0
  %v1618 = vadd.f32 %v1544, %v1617
  %1619 = vdwg.mxu0
  %1620 = vmatprep.subr.mxu0 %v1536
  %1621 = vmatpush1.msra.mxu0 %v1535
  %1622 = vmatprep.subr.mxu0 0.0
  %1623 = vmatpush1.msra.mxu0 0.0
  %1624 = vmatprep.subr.mxu0 0.0
  %1625 = vmatpush1.msra.mxu0 0.0
  %1626 = vmatprep.subr.mxu0 0.0
  %1627 = vmatpush1.msra.mxu0 0.0
  %1628 = vmatprep.subr.mxu0 0.0
  %1629 = vmatpush1.msra.mxu0 0.0
  %1630 = vmatprep.subr.mxu0 0.0
  %1631 = vmatpush1.msra.mxu0 0.0
  %1632 = vmatprep.subr.mxu0 0.0
  %1633 = vmatpush1.msra.mxu0 0.0
  %1634 = vmatprep.subr.mxu0 0.0
  %1635 = vmatpush1.msra.mxu0 0.0
  %1636 = vmatprep.subr.mxu0 0.0
  %1637 = vmatpush1.msra.mxu0 0.0
  %1638 = vmatprep.subr.mxu0 0.0
  %1639 = vmatpush1.msra.mxu0 0.0
  %1640 = vmatprep.subr.mxu0 0.0
  %1641 = vmatpush1.msra.mxu0 0.0
  %1642 = vmatprep.subr.mxu0 0.0
  %1643 = vmatpush1.msra.mxu0 0.0
  %1644 = vmatprep.subr.mxu0 0.0
  %1645 = vmatpush1.msra.mxu0 0.0
  %1646 = vmatprep.subr.mxu0 0.0
  %1647 = vmatpush1.msra.mxu0 0.0
  %1648 = vmatprep.subr.mxu0 0.0
  %1649 = vmatpush1.msra.mxu0 0.0
  %1650 = vmatprep.subr.mxu0 0.0
  %1651 = vmatpush1.msra.mxu0 0.0
  %1652 = vmatprep.subr.mxu0 0.0
  %1653 = vmatpush1.msra.mxu0 0.0
  %1654 = vmatprep.subr.mxu0 0.0
  %1655 = vmatpush1.msra.mxu0 0.0
  %1656 = vmatprep.subr.mxu0 0.0
  %1657 = vmatpush1.msra.mxu0 0.0
  %1658 = vmatprep.subr.mxu0 0.0
  %1659 = vmatpush1.msra.mxu0 0.0
  %1660 = vmatprep.subr.mxu0 0.0
  %1661 = vmatpush1.msra.mxu0 0.0
  %1662 = vmatprep.subr.mxu0 0.0
  %1663 = vmatpush1.msra.mxu0 0.0
  %1664 = vmatprep.subr.mxu0 0.0
  %1665 = vmatpush1.msra.mxu0 0.0
  %1666 = vmatprep.subr.mxu0 0.0
  %1667 = vmatpush1.msra.mxu0 0.0
  %1668 = vmatprep.subr.mxu0 0.0
  %1669 = vmatpush1.msra.mxu0 0.0
  %1670 = vmatprep.subr.mxu0 0.0
  %1671 = vmatpush1.msra.mxu0 0.0
  %1672 = vmatprep.subr.mxu0 0.0
  %1673 = vmatpush1.msra.mxu0 0.0
  %1674 = vmatprep.subr.mxu0 0.0
  %1675 = vmatpush1.msra.mxu0 0.0
  %1676 = vmatprep.subr.mxu0 0.0
  %1677 = vmatpush1.msra.mxu0 0.0
  %1678 = vmatprep.subr.mxu0 0.0
  %1679 = vmatpush1.msra.mxu0 0.0
  %1680 = vmatprep.subr.mxu0 0.0
  %1681 = vmatpush1.msra.mxu0 0.0
  %1682 = vmatprep.subr.mxu0 0.0
  %1683 = vmatpush1.msra.mxu0 0.0
  %1684 = vmatprep.mubr.f32.mxu0 0.0
  %1685 = vmatmul.mubr.f32.gmra.mrb[0].mxu0 %v1547
  %v1686 = vpop.f32.mrb[0].mxu0
  %v1687 = vadd.f32 %v1544, %v1686
  %v1688 = vpop.f32.mrb[0].mxu0
  %v1689 = vadd.f32 %v1544, %v1688
  %1690 = vdwg.mxu0
  %1691 = vrot.lane.b32.xlu0 %v1616, 16
  %v1692 = vpop.permute.xlu0 %1691
  %1693 = vrot.lane.b32.xlu0 %v1618, 16
  %v1694 = vpop.permute.xlu0 %1693
  %1695 = vrot.lane.b32.xlu0 %v1687, 16
  %v1696 = vpop.permute.xlu0 %1695
  %1697 = vrot.lane.b32.xlu0 %v1689, 16
  %v1698 = vpop.permute.xlu0 %1697
  %v1699 = vsel %vm131, %v1696, %v1698
  %v1700 = vsel %vm131, %v1694, %v1696
  %v1701 = vsel %vm131, %v1692, %v1694
  %v1702 = vsel %vm131, %v1698, %v1692
  %v1703 = vmul.f32 %v31, %v1702
  %v1704 = vmul.f32 %v35, %v1701
  %v1705 = vmul.f32 %v39, %v1700
  %v1706 = vmul.f32 %v43, %v1699
  %1707 = vrot.lane.b32.xlu0 %v1616, 112
  %v1708 = vpop.permute.xlu0 %1707
  %1709 = vrot.lane.b32.xlu0 %v1618, 112
  %v1710 = vpop.permute.xlu0 %1709
  %1711 = vrot.lane.b32.xlu0 %v1687, 112
  %v1712 = vpop.permute.xlu0 %1711
  %1713 = vrot.lane.b32.xlu0 %v1689, 112
  %v1714 = vpop.permute.xlu0 %1713
  %v1715 = vsel %vm148, %v1712, %v1714
  %v1716 = vsel %vm148, %v1710, %v1712
  %v1717 = vsel %vm148, %v1708, %v1710
  %v1718 = vsel %vm148, %v1714, %v1708
  %v1719 = vmul.f32 %v54, %v1717
  %v1720 = vmul.f32 %v58, %v1716
  %v1721 = vmul.f32 %v62, %v1715
  %v1722 = vmul.f32 %v66, %v1718
  %s1723 = scalar_lea.vmem %s4, 144
  %v1724 = vld [vmem:[%s1723] sm:$0xff]
  %1726 = vset.pattern.permute.xlu0 0
  %1727 = vperm.xlu0 %1726, %v1724
  %v1728 = vpop.permute.xlu0 %1727
  %v1730 = vmul.f32 %v1728, %v1703
  %v1731 = vmul.f32 %v1728, %v1704
  %v1732 = vmul.f32 %v1728, %v1705
  %v1733 = vmul.f32 %v1728, %v1706
  %s1734 = scalar_lea.vmem %s4, 168
  %v1735 = vld [vmem:[%s1734] sm:$0xff]
  %1737 = vset.pattern.permute.xlu0 0
  %1738 = vperm.xlu0 %1737, %v1735
  %v1739 = vpop.permute.xlu0 %1738
  %v1741 = vmul.f32 %v1739, %v1616
  %v1742 = vmul.f32 %v1739, %v1618
  %v1743 = vmul.f32 %v1739, %v1687
  %v1744 = vmul.f32 %v1739, %v1689
  %v1745 = vadd.f32 %v1730, %v1741
  %v1746 = vadd.f32 %v1731, %v1742
  %v1747 = vadd.f32 %v1732, %v1743
  %v1748 = vadd.f32 %v1733, %v1744
  %s1749 = scalar_lea.vmem %s4, 192
  %v1750 = vld [vmem:[%s1749] sm:$0xff]
  %1752 = vset.pattern.permute.xlu0 0
  %1753 = vperm.xlu0 %1752, %v1750
  %v1754 = vpop.permute.xlu0 %1753
  %v1756 = vmul.f32 %v1754, %v1719
  %v1757 = vmul.f32 %v1754, %v1720
  %v1758 = vmul.f32 %v1754, %v1721
  %v1759 = vmul.f32 %v1754, %v1722
  %v1760 = vadd.f32 %v1745, %v1756
  %v1761 = vadd.f32 %v1746, %v1757
  %v1762 = vadd.f32 %v1747, %v1758
  %v1763 = vadd.f32 %v1748, %v1759
  %s1764 = scalar_lea.vmem %s4, 152
  %v1765 = vld [vmem:[%s1764] sm:$0xff]
  %1767 = vset.pattern.permute.xlu0 0
  %1768 = vperm.xlu0 %1767, %v1765
  %v1769 = vpop.permute.xlu0 %1768
  %v1771 = vmul.f32 %v1769, %v1703
  %v1772 = vmul.f32 %v1769, %v1704
  %v1773 = vmul.f32 %v1769, %v1705
  %v1774 = vmul.f32 %v1769, %v1706
  %s1775 = scalar_lea.vmem %s4, 176
  %v1776 = vld [vmem:[%s1775] sm:$0xff]
  %1778 = vset.pattern.permute.xlu0 0
  %1779 = vperm.xlu0 %1778, %v1776
  %v1780 = vpop.permute.xlu0 %1779
  %v1782 = vmul.f32 %v1780, %v1616
  %v1783 = vmul.f32 %v1780, %v1618
  %v1784 = vmul.f32 %v1780, %v1687
  %v1785 = vmul.f32 %v1780, %v1689
  %v1786 = vadd.f32 %v1771, %v1782
  %v1787 = vadd.f32 %v1772, %v1783
  %v1788 = vadd.f32 %v1773, %v1784
  %v1789 = vadd.f32 %v1774, %v1785
  %s1790 = scalar_lea.vmem %s4, 200
  %v1791 = vld [vmem:[%s1790] sm:$0xff]
  %1793 = vset.pattern.permute.xlu0 0
  %1794 = vperm.xlu0 %1793, %v1791
  %v1795 = vpop.permute.xlu0 %1794
  %v1797 = vmul.f32 %v1795, %v1719
  %v1798 = vmul.f32 %v1795, %v1720
  %v1799 = vmul.f32 %v1795, %v1721
  %v1800 = vmul.f32 %v1795, %v1722
  %v1801 = vadd.f32 %v1786, %v1797
  %v1802 = vadd.f32 %v1787, %v1798
  %v1803 = vadd.f32 %v1788, %v1799
  %v1804 = vadd.f32 %v1789, %v1800
  %s1805 = scalar_lea.vmem %s4, 160
  %v1806 = vld [vmem:[%s1805] sm:$0xff]
  %1808 = vset.pattern.permute.xlu0 0
  %1809 = vperm.xlu0 %1808, %v1806
  %v1810 = vpop.permute.xlu0 %1809
  %v1812 = vmul.f32 %v1810, %v1703
  %v1813 = vmul.f32 %v1810, %v1704
  %v1814 = vmul.f32 %v1810, %v1705
  %v1815 = vmul.f32 %v1810, %v1706
  %s1816 = scalar_lea.vmem %s4, 184
  %v1817 = vld [vmem:[%s1816] sm:$0xff]
  %1819 = vset.pattern.permute.xlu0 0
  %1820 = vperm.xlu0 %1819, %v1817
  %v1821 = vpop.permute.xlu0 %1820
  %v1823 = vmul.f32 %v1821, %v1616
  %v1824 = vmul.f32 %v1821, %v1618
  %v1825 = vmul.f32 %v1821, %v1687
  %v1826 = vmul.f32 %v1821, %v1689
  %v1827 = vadd.f32 %v1812, %v1823
  %v1828 = vadd.f32 %v1813, %v1824
  %v1829 = vadd.f32 %v1814, %v1825
  %v1830 = vadd.f32 %v1815, %v1826
  %s1831 = scalar_lea.vmem %s4, 208
  %v1832 = vld [vmem:[%s1831] sm:$0xff]
  %1834 = vset.pattern.permute.xlu0 0
  %1835 = vperm.xlu0 %1834, %v1832
  %v1836 = vpop.permute.xlu0 %1835
  %v1838 = vmul.f32 %v1836, %v1719
  %v1839 = vmul.f32 %v1836, %v1720
  %v1840 = vmul.f32 %v1836, %v1721
  %v1841 = vmul.f32 %v1836, %v1722
  %v1842 = vadd.f32 %v1827, %v1838
  %v1843 = vadd.f32 %v1828, %v1839
  %v1844 = vadd.f32 %v1829, %v1840
  %v1845 = vadd.f32 %v1830, %v1841
  %1846 = vrot.lane.b32.xlu0 %v1760, 1
  %v1847 = vpop.permute.xlu0 %1846
  %1848 = vrot.lane.b32.xlu0 %v1761, 1
  %v1849 = vpop.permute.xlu0 %1848
  %1850 = vrot.lane.b32.xlu0 %v1762, 1
  %v1851 = vpop.permute.xlu0 %1850
  %1852 = vrot.lane.b32.xlu0 %v1763, 1
  %v1853 = vpop.permute.xlu0 %1852
  %v1854 = vsel %vm287, %v1851, %v1853
  %v1855 = vsel %vm287, %v1849, %v1851
  %v1856 = vsel %vm287, %v1847, %v1849
  %v1857 = vsel %vm287, %v1853, %v1847
  %v1858 = vmul.f32 %v77, %v1857
  %v1859 = vmul.f32 %v81, %v1856
  %v1860 = vmul.f32 %v85, %v1855
  %v1861 = vmul.f32 %v89, %v1854
  %v1862 = vadd.f32 %v1858, %v1801
  %v1863 = vadd.f32 %v1859, %v1802
  %v1864 = vadd.f32 %v1860, %v1803
  %v1865 = vadd.f32 %v1861, %v1804
  %1866 = vrot.lane.b32.xlu0 %v1842, 127
  %v1867 = vpop.permute.xlu0 %1866
  %1868 = vrot.lane.b32.xlu0 %v1843, 127
  %v1869 = vpop.permute.xlu0 %1868
  %1870 = vrot.lane.b32.xlu0 %v1844, 127
  %v1871 = vpop.permute.xlu0 %1870
  %1872 = vrot.lane.b32.xlu0 %v1845, 127
  %v1873 = vpop.permute.xlu0 %1872
  %v1874 = vsel %vm308, %v1871, %v1873
  %v1875 = vsel %vm308, %v1869, %v1871
  %v1876 = vsel %vm308, %v1867, %v1869
  %v1877 = vsel %vm308, %v1873, %v1867
  %v1878 = vmul.f32 %v100, %v1876
  %v1879 = vmul.f32 %v104, %v1875
  %v1880 = vmul.f32 %v108, %v1874
  %v1881 = vmul.f32 %v112, %v1877
  %v1882 = vadd.f32 %v1862, %v1878
  %v1883 = vadd.f32 %v1863, %v1879
  %v1884 = vadd.f32 %v1864, %v1880
  %v1885 = vadd.f32 %v1865, %v1881
  %s1886 = scalar_lea.vmem %s6, 72
  %v1887 = vld [vmem:[%s1886] sm:$0xff]
  %1889 = vset.pattern.permute.xlu0 0
  %1890 = vperm.xlu0 %1889, %v1887
  %v1891 = vpop.permute.xlu0 %1890
  %v1893 = vadd.f32 %v1882, %v1891
  %v1894 = vadd.f32 %v1883, %v1891
  %v1895 = vadd.f32 %v1884, %v1891
  %v1896 = vadd.f32 %v1885, %v1891
  %v1897 = vmax.f32 %v1893, 0.0
  %v1898 = vmax.f32 %v1894, 0.0
  %v1899 = vmax.f32 %v1895, 0.0
  %v1900 = vmax.f32 %v1896, 0.0
  %s1901 = scalar_lea.vmem %s5, 32
  %v1902 = vld [vmem:[%s1901] sm:$0xff]
  %v1903 = vadd.f32 %v1071, %v1897
  %v1904 = vadd.f32 %v1072, %v1898
  %v1905 = vadd.f32 %v1073, %v1899
  %v1906 = vadd.f32 %v1074, %v1900
  %s1907 = scalar_lea.vmem %s6, 80
  %v1908 = vld [vmem:[%s1907] sm:$0xff]
  %1910 = vset.pattern.permute.xlu0 0
  %1911 = vperm.xlu0 %1910, %v1908
  %v1912 = vpop.permute.xlu0 %1911
  %v1915 = vsel %vm328, %v1902, 0
  %1917 = vmatprep.subr.mxu0 %v1904
  %1918 = vmatpush1.msra.mxu0 %v1903
  %1919 = vmatprep.subr.mxu0 0.0
  %1920 = vmatpush1.msra.mxu0 0.0
  %1921 = vmatprep.subr.mxu0 0.0
  %1922 = vmatpush1.msra.mxu0 0.0
  %1923 = vmatprep.subr.mxu0 0.0
  %1924 = vmatpush1.msra.mxu0 0.0
  %1925 = vmatprep.subr.mxu0 0.0
  %1926 = vmatpush1.msra.mxu0 0.0
  %1927 = vmatprep.subr.mxu0 0.0
  %1928 = vmatpush1.msra.mxu0 0.0
  %1929 = vmatprep.subr.mxu0 0.0
  %1930 = vmatpush1.msra.mxu0 0.0
  %1931 = vmatprep.subr.mxu0 0.0
  %1932 = vmatpush1.msra.mxu0 0.0
  %1933 = vmatprep.subr.mxu0 0.0
  %1934 = vmatpush1.msra.mxu0 0.0
  %1935 = vmatprep.subr.mxu0 0.0
  %1936 = vmatpush1.msra.mxu0 0.0
  %1937 = vmatprep.subr.mxu0 0.0
  %1938 = vmatpush1.msra.mxu0 0.0
  %1939 = vmatprep.subr.mxu0 0.0
  %1940 = vmatpush1.msra.mxu0 0.0
  %1941 = vmatprep.subr.mxu0 0.0
  %1942 = vmatpush1.msra.mxu0 0.0
  %1943 = vmatprep.subr.mxu0 0.0
  %1944 = vmatpush1.msra.mxu0 0.0
  %1945 = vmatprep.subr.mxu0 0.0
  %1946 = vmatpush1.msra.mxu0 0.0
  %1947 = vmatprep.subr.mxu0 0.0
  %1948 = vmatpush1.msra.mxu0 0.0
  %1949 = vmatprep.subr.mxu0 0.0
  %1950 = vmatpush1.msra.mxu0 0.0
  %1951 = vmatprep.subr.mxu0 0.0
  %1952 = vmatpush1.msra.mxu0 0.0
  %1953 = vmatprep.subr.mxu0 0.0
  %1954 = vmatpush1.msra.mxu0 0.0
  %1955 = vmatprep.subr.mxu0 0.0
  %1956 = vmatpush1.msra.mxu0 0.0
  %1957 = vmatprep.subr.mxu0 0.0
  %1958 = vmatpush1.msra.mxu0 0.0
  %1959 = vmatprep.subr.mxu0 0.0
  %1960 = vmatpush1.msra.mxu0 0.0
  %1961 = vmatprep.subr.mxu0 0.0
  %1962 = vmatpush1.msra.mxu0 0.0
  %1963 = vmatprep.subr.mxu0 0.0
  %1964 = vmatpush1.msra.mxu0 0.0
  %1965 = vmatprep.subr.mxu0 0.0
  %1966 = vmatpush1.msra.mxu0 0.0
  %1967 = vmatprep.subr.mxu0 0.0
  %1968 = vmatpush1.msra.mxu0 0.0
  %1969 = vmatprep.subr.mxu0 0.0
  %1970 = vmatpush1.msra.mxu0 0.0
  %1971 = vmatprep.subr.mxu0 0.0
  %1972 = vmatpush1.msra.mxu0 0.0
  %1973 = vmatprep.subr.mxu0 0.0
  %1974 = vmatpush1.msra.mxu0 0.0
  %1975 = vmatprep.subr.mxu0 0.0
  %1976 = vmatpush1.msra.mxu0 0.0
  %1977 = vmatprep.subr.mxu0 0.0
  %1978 = vmatpush1.msra.mxu0 0.0
  %1979 = vmatprep.subr.mxu0 0.0
  %1980 = vmatpush1.msra.mxu0 0.0
  %1981 = vmatprep.mubr.f32.mxu0 0.0
  %1982 = vmatmul.mubr.f32.gmra.mrb[0].mxu0 %v1915
  %v1983 = vpop.f32.mrb[0].mxu0
  %v1984 = vadd.f32 %v1912, %v1983
  %v1985 = vpop.f32.mrb[0].mxu0
  %v1986 = vadd.f32 %v1912, %v1985
  %1987 = vdwg.mxu0
  %1988 = vmatprep.subr.mxu0 %v1906
  %1989 = vmatpush1.msra.mxu0 %v1905
  %1990 = vmatprep.subr.mxu0 0.0
  %1991 = vmatpush1.msra.mxu0 0.0
  %1992 = vmatprep.subr.mxu0 0.0
  %1993 = vmatpush1.msra.mxu0 0.0
  %1994 = vmatprep.subr.mxu0 0.0
  %1995 = vmatpush1.msra.mxu0 0.0
  %1996 = vmatprep.subr.mxu0 0.0
  %1997 = vmatpush1.msra.mxu0 0.0
  %1998 = vmatprep.subr.mxu0 0.0
  %1999 = vmatpush1.msra.mxu0 0.0
  %2000 = vmatprep.subr.mxu0 0.0
  %2001 = vmatpush1.msra.mxu0 0.0
  %2002 = vmatprep.subr.mxu0 0.0
  %2003 = vmatpush1.msra.mxu0 0.0
  %2004 = vmatprep.subr.mxu0 0.0
  %2005 = vmatpush1.msra.mxu0 0.0
  %2006 = vmatprep.subr.mxu0 0.0
  %2007 = vmatpush1.msra.mxu0 0.0
  %2008 = vmatprep.subr.mxu0 0.0
  %2009 = vmatpush1.msra.mxu0 0.0
  %2010 = vmatprep.subr.mxu0 0.0
  %2011 = vmatpush1.msra.mxu0 0.0
  %2012 = vmatprep.subr.mxu0 0.0
  %2013 = vmatpush1.msra.mxu0 0.0
  %2014 = vmatprep.subr.mxu0 0.0
  %2015 = vmatpush1.msra.mxu0 0.0
  %2016 = vmatprep.subr.mxu0 0.0
  %2017 = vmatpush1.msra.mxu0 0.0
  %2018 = vmatprep.subr.mxu0 0.0
  %2019 = vmatpush1.msra.mxu0 0.0
  %2020 = vmatprep.subr.mxu0 0.0
  %2021 = vmatpush1.msra.mxu0 0.0
  %2022 = vmatprep.subr.mxu0 0.0
  %2023 = vmatpush1.msra.mxu0 0.0
  %2024 = vmatprep.subr.mxu0 0.0
  %2025 = vmatpush1.msra.mxu0 0.0
  %2026 = vmatprep.subr.mxu0 0.0
  %2027 = vmatpush1.msra.mxu0 0.0
  %2028 = vmatprep.subr.mxu0 0.0
  %2029 = vmatpush1.msra.mxu0 0.0
  %2030 = vmatprep.subr.mxu0 0.0
  %2031 = vmatpush1.msra.mxu0 0.0
  %2032 = vmatprep.subr.mxu0 0.0
  %2033 = vmatpush1.msra.mxu0 0.0
  %2034 = vmatprep.subr.mxu0 0.0
  %2035 = vmatpush1.msra.mxu0 0.0
  %2036 = vmatprep.subr.mxu0 0.0
  %2037 = vmatpush1.msra.mxu0 0.0
  %2038 = vmatprep.subr.mxu0 0.0
  %2039 = vmatpush1.msra.mxu0 0.0
  %2040 = vmatprep.subr.mxu0 0.0
  %2041 = vmatpush1.msra.mxu0 0.0
  %2042 = vmatprep.subr.mxu0 0.0
  %2043 = vmatpush1.msra.mxu0 0.0
  %2044 = vmatprep.subr.mxu0 0.0
  %2045 = vmatpush1.msra.mxu0 0.0
  %2046 = vmatprep.subr.mxu0 0.0
  %2047 = vmatpush1.msra.mxu0 0.0
  %2048 = vmatprep.subr.mxu0 0.0
  %2049 = vmatpush1.msra.mxu0 0.0
  %2050 = vmatprep.subr.mxu0 0.0
  %2051 = vmatpush1.msra.mxu0 0.0
  %2052 = vmatprep.mubr.f32.mxu0 0.0
  %2053 = vmatmul.mubr.f32.gmra.mrb[0].mxu0 %v1915
  %v2054 = vpop.f32.mrb[0].mxu0
  %v2055 = vadd.f32 %v1912, %v2054
  %v2056 = vpop.f32.mrb[0].mxu0
  %v2057 = vadd.f32 %v1912, %v2056
  %2058 = vdwg.mxu0
  %v2059 = vadd.f32 %v825, %v1984
  %v2060 = vadd.f32 %v826, %v1986
  %v2061 = vadd.f32 %v827, %v2055
  %v2062 = vadd.f32 %v828, %v2057
  %2063 = vst [vmem:[%s7] sm:$0xff] %v2059
  %2064 = vst [vmem:[%s7 + $0x8] sm:$0xff] %v2060
  %2065 = vst [vmem:[%s7 + $0x10] sm:$0xff] %v2061
  %2066 = vst [vmem:[%s7 + $0x18] sm:$0xff] %v2062
  // Predicated region
  $region30: #{kan_double_conv_forward.1} parent=0 // pred_check
    _
  $region31: #{kan_double_conv_forward.1} parent=0 // pred_check_branch
    %2068 = sbr.rel (0) target = $region33
  $region32: #{kan_double_conv_forward.1} parent=0 // pred_region
    _
  $region33: #{kan_double_conv_forward.1} parent=0 // pred_fallthru
    _
  // Predicated region
  $region34: #{kan_double_conv_forward.1} parent=0 // pred_check
    _
  $region35: #{kan_double_conv_forward.1} parent=0 // pred_check_branch
    %2070 = sbr.rel (0) target = $region37
  $region36: #{kan_double_conv_forward.1} parent=0 // pred_region
    _
  $region37: #{kan_double_conv_forward.1} parent=0 // pred_fallthru
    _

</llo_original>
